<compile_context>
chip_gen: v7x
topology: tpu7x:2x2x1
jax: 0.10.0
libtpu: 0.0.40
codegen_flags: <defaults>
</compile_context>

<pallas_src>
import jax
import jax.numpy as jnp
import numpy as np
from jax.experimental import pallas as pl
from jax.experimental.pallas import tpu as pltpu

NUM_GROUPS = 2
GN_EPS = 1e-6


def _group_norm_cn(x, gamma, beta, num_groups, eps=GN_EPS):
    """GroupNorm of one sample in (C, N) layout.

    Two-pass mean/variance per group; per-group statistics are folded into
    gamma/beta so the full (C, N) tile only sees a single fused multiply-add.
    x: (C, N) float32; gamma/beta: (C, 1) float32.
    """
    C, N = x.shape
    cg = C // num_groups
    n = float(cg * N)
    ch = jax.lax.broadcasted_iota(jnp.int32, (C, 1), 0)
    scale = jnp.zeros((C, 1), jnp.float32)
    shift = jnp.zeros((C, 1), jnp.float32)
    for g in range(num_groups):
        xg = x[g * cg:(g + 1) * cg, :]
        mean = jnp.sum(xg) / n
        var = jnp.sum((xg - mean) ** 2) / n          # two-pass variance
        inv = jax.lax.rsqrt(var + eps)
        sel = (ch >= g * cg) & (ch < (g + 1) * cg)
        scale = jnp.where(sel, inv, scale)
        shift = jnp.where(sel, -mean * inv, shift)
    a = scale * gamma            # (C, 1)
    b = shift * gamma + beta     # (C, 1)
    return x * a + b


def _attn_kernel(x_ref, g_ref, be_ref,
                 wq_ref, bq_ref, wkT_ref, bk_ref, wv_ref, bv_ref,
                 wp_ref, bp_ref, out_ref,
                 qT_s, k_s, vT_s):
    qi = pl.program_id(1)
    tq = out_ref.shape[2]
    bf16 = jnp.bfloat16

    # ---- once per batch: GroupNorm + q/k/v projections, cached in VMEM scratch ----
    @pl.when(qi == 0)
    def _setup():
        x = x_ref[0]                                                  # (C, N) f32
        h = _group_norm_cn(x, g_ref[...], be_ref[...], NUM_GROUPS)
        hT = h.T                                                      # (N, C): one small XLU transpose / batch
        # softmax scale C**-0.5 is already folded into wq / bq by the wrapper.
        qT = jnp.dot(hT, wq_ref[...], preferred_element_type=jnp.float32) + bq_ref[...]
        vT = jnp.dot(hT, wv_ref[...], preferred_element_type=jnp.float32) + bv_ref[...]
        k = jnp.dot(wkT_ref[...], h, preferred_element_type=jnp.float32) + bk_ref[...]
        qT_s[...] = qT.astype(bf16)   # (N, C)
        vT_s[...] = vT.astype(bf16)   # (N, C)
        k_s[...] = k.astype(bf16)     # (C, N)

    # ---- per query-row tile ----
    q0 = pl.multiple_of(qi * tq, tq)
    q_t = qT_s[pl.ds(q0, tq), :]                                      # (tq, C) bf16

    # logits (tq, N): standard (tq,C)@(C,N) MXU matmul, bf16 inputs / f32 accumulate.
    logits = jnp.dot(q_t, k_s[...], preferred_element_type=jnp.float32)

    # Exact row softmax over the full key axis (f32 math).
    m = jnp.max(logits, axis=-1, keepdims=True)
    e = jnp.exp(logits - m)
    s = jnp.sum(e, axis=-1, keepdims=True)
    w = e * pl.reciprocal(s, approx=True)        # EUP reciprocal instead of N^2 divide

    # attn^T (tq, C): standard (tq,N)@(N,C) matmul -- avoids the (tq,N) XLU transpose
    # that a dot_general(v, w, ((1,),(1,))) contraction would imply.
    attnT = jnp.dot(w.astype(bf16), vT_s[...], preferred_element_type=jnp.float32)

    # proj_out NIN in (tq, C) layout, then one small (tq,C)->(C,tq) transpose.
    # TODO(synk): nin_proj_out has init_scale=0.0 in the original module; that only
    # affects weight initialization, not the forward math implemented here.
    projT = jnp.dot(attnT, wp_ref[...], preferred_element_type=jnp.float32) + bp_ref[...]

    x_t = x_ref[0, :, pl.ds(q0, tq)]                                  # (C, tq) residual slice
    out_ref[0] = (x_t + projT.T).astype(out_ref.dtype)


@jax.jit
def attn_block_forward(x_nchw, params):
    """x_nchw: (B, C, H, W) float32. Returns (B, C, H, W) float32."""
    B, C, H, W = x_nchw.shape
    N = H * W
    f32 = jnp.float32
    x = x_nchw.reshape(B, C, N)                   # keep NCHW; spatial goes on lanes

    tq = min(128, N)                              # query-row tile (lane-dense output blocks)
    assert N % tq == 0, "spatial size must be a multiple of the query-row tile"
    nq = N // tq

    scale = float(C) ** -0.5
    # NIN weights kept in their native (Cin, Cout) orientation for the (N, C)-layout
    # matmuls; only wk is transposed (tiny, done once in XLA) so k is lane-dense (C, N).
    wq = params["wq"].astype(f32) * scale                    # softmax scale folded into q
    bq = (params["bq"].astype(f32) * scale).reshape(1, C)
    wkT = params["wk"].astype(f32).T
    bk = params["bk"].astype(f32).reshape(C, 1)
    wv = params["wv"].astype(f32)
    bv = params["bv"].astype(f32).reshape(1, C)
    wp = params["wp"].astype(f32)
    bp = params["bp"].astype(f32).reshape(1, C)
    gg = params["gn_g"].astype(f32).reshape(C, 1)
    gb = params["gn_b"].astype(f32).reshape(C, 1)

    # Constant index maps -> weight/bias blocks are fetched once and stay resident
    # (not re-DMA'd per grid step).
    cc = pl.BlockSpec((C, C), lambda b, qi: (0, 0))
    c1 = pl.BlockSpec((C, 1), lambda b, qi: (0, 0))
    r1 = pl.BlockSpec((1, C), lambda b, qi: (0, 0))

    out = pl.pallas_call(
        _attn_kernel,
        out_shape=jax.ShapeDtypeStruct((B, C, N), f32),
        grid=(B, nq),
        in_specs=[
            # x: full spatial extent, constant in qi -> one HBM fetch per batch.
            pl.BlockSpec((1, C, N), lambda b, qi: (b, 0, 0)),
            c1, c1,          # GroupNorm gamma / beta
            cc, r1,          # wq (scale-folded, Cin x Cout) / bq row
            cc, c1,          # wk^T (Cout x Cin) / bk col
            cc, r1,          # wv (Cin x Cout) / bv row
            cc, r1,          # wp (Cin x Cout) / bp row
        ],
        out_specs=pl.BlockSpec((1, C, tq), lambda b, qi: (b, 0, qi)),
        scratch_shapes=[
            pltpu.VMEM((N, C), jnp.bfloat16),   # q^T cache (softmax scale folded)
            pltpu.VMEM((C, N), jnp.bfloat16),   # k cache
            pltpu.VMEM((N, C), jnp.bfloat16),   # v^T cache
        ],
        # Batch axis "parallel" (shards across TensorCores on v7x); the query-tile axis
        # is "arbitrary" because it reuses the per-batch cached projections.
        # When scaling C / H*W to real sizes also set vmem_limit_bytes here.
        compiler_params=pltpu.CompilerParams(
            dimension_semantics=("parallel", "arbitrary")),
    )(x, gg, gb, wq, bq, wkT, bk, wv, bv, wp, bp)

    return out.reshape(B, C, H, W)


# --------------------------- Pure-JAX reference -------------------------------

def ref_forward(x, params):
    B, C, H, W = x.shape
    G = NUM_GROUPS

    def gn(t):
        tg = t.reshape(B, G, C // G, H, W)
        m = tg.mean(axis=(2, 3, 4), keepdims=True)
        v = tg.var(axis=(2, 3, 4), keepdims=True)
        tn = ((tg - m) * jax.lax.rsqrt(v + GN_EPS)).reshape(B, C, H, W)
        return (tn * params["gn_g"].reshape(1, C, 1, 1)
                + params["gn_b"].reshape(1, C, 1, 1))

    def nin(t, w, b):
        return jnp.einsum("bchw,cd->bdhw", t, w) + b.reshape(1, C, 1, 1)

    h = gn(x)
    q = nin(h, params["wq"], params["bq"])
    k = nin(h, params["wk"], params["bk"])
    v = nin(h, params["wv"], params["bv"])
    w = jnp.einsum("bchw,bcHW->bhwHW", q, k) * (C ** -0.5)
    w = w.reshape(B, H, W, H * W)
    w = jax.nn.softmax(w, axis=-1)
    w = w.reshape(B, H, W, H, W)
    h = jnp.einsum("bhwHW,bcHW->bchw", w, v)
    h = nin(h, params["wp"], params["bp"])
    return x + h


# --------------------------- Main -------------------------------

if __name__ == "__main__":
    B, C, H, W = 2, 8, 16, 16
    f32 = jnp.float32

    key = jax.random.PRNGKey(0)
    ks = jax.random.split(key, 11)

    x = jax.random.normal(ks[0], (B, C, H, W), f32)        # PyTorch NCHW layout

    params = {
        "gn_g": 1.0 + 0.1 * jax.random.normal(ks[1], (C,), f32),
        "gn_b": 0.1 * jax.random.normal(ks[2], (C,), f32),
        "wq": 0.2 * jax.random.normal(ks[3], (C, C), f32),
        "bq": 0.1 * jax.random.normal(ks[4], (C,), f32),
        "wk": 0.2 * jax.random.normal(ks[5], (C, C), f32),
        "bk": 0.1 * jax.random.normal(ks[6], (C,), f32),
        "wv": 0.2 * jax.random.normal(ks[7], (C, C), f32),
        "bv": 0.1 * jax.random.normal(ks[8], (C,), f32),
        # init_scale=0.0 in the original; random here so the kernel path is exercised.
        "wp": 0.2 * jax.random.normal(ks[9], (C, C), f32),
        "bp": 0.1 * jax.random.normal(ks[10], (C,), f32),
    }

    out = attn_block_forward(x, params)
    jax.block_until_ready(out)
    assert out.shape == (B, C, H, W)

    ref = ref_forward(x, params)
    # Slightly looser than the all-f32 version: the two N-sized matmuls use bf16 MXU
    # inputs and the softmax denominator uses the approximate EUP reciprocal.
    np.testing.assert_allclose(np.asarray(out), np.asarray(ref), rtol=5e-3, atol=5e-3)

    print("KERNEL_OK")
</pallas_src>

<mosaic_0001>
module attributes {stable_mosaic.version = 11 : i64} {
  func.func @_attn_kernel(%arg0: i32, %arg1: i32, %arg2: memref<1x8x256xf32, #tpu.memory_space<vmem>>, %arg3: memref<8x1xf32, #tpu.memory_space<vmem>>, %arg4: memref<8x1xf32, #tpu.memory_space<vmem>>, %arg5: memref<8x8xf32, #tpu.memory_space<vmem>>, %arg6: memref<1x8xf32, #tpu.memory_space<vmem>>, %arg7: memref<8x8xf32, #tpu.memory_space<vmem>>, %arg8: memref<8x1xf32, #tpu.memory_space<vmem>>, %arg9: memref<8x8xf32, #tpu.memory_space<vmem>>, %arg10: memref<1x8xf32, #tpu.memory_space<vmem>>, %arg11: memref<8x8xf32, #tpu.memory_space<vmem>>, %arg12: memref<1x8xf32, #tpu.memory_space<vmem>>, %arg13: memref<1x8x128xf32, #tpu.memory_space<vmem>>, %arg14: memref<256x8xbf16, #tpu.memory_space<vmem>>, %arg15: memref<8x256xbf16, #tpu.memory_space<vmem>>, %arg16: memref<256x8xbf16, #tpu.memory_space<vmem>>) attributes {dimension_semantics = [#tpu.dimension_semantics<parallel>, #tpu.dimension_semantics<arbitrary>], iteration_bounds = array<i64: 2, 2>, scalar_prefetch = 0 : i64, scratch_operands = 3 : i64, tpu.core_type = #tpu.core_type<tc>, window_params = [{transform_indices = @transform_0, window_bounds = array<i64: 1, 8, 256>}, {pipeline_mode = #tpu.pipeline_mode<synchronous>, transform_indices = @transform_1, window_bounds = array<i64: 8, 1>}, {pipeline_mode = #tpu.pipeline_mode<synchronous>, transform_indices = @transform_2, window_bounds = array<i64: 8, 1>}, {pipeline_mode = #tpu.pipeline_mode<synchronous>, transform_indices = @transform_3, window_bounds = array<i64: 8, 8>}, {pipeline_mode = #tpu.pipeline_mode<synchronous>, transform_indices = @transform_4, window_bounds = array<i64: 1, 8>}, {pipeline_mode = #tpu.pipeline_mode<synchronous>, transform_indices = @transform_5, window_bounds = array<i64: 8, 8>}, {pipeline_mode = #tpu.pipeline_mode<synchronous>, transform_indices = @transform_6, window_bounds = array<i64: 8, 1>}, {pipeline_mode = #tpu.pipeline_mode<synchronous>, transform_indices = @transform_7, window_bounds = array<i64: 8, 8>}, {pipeline_mode = #tpu.pipeline_mode<synchronous>, transform_indices = @transform_8, window_bounds = array<i64: 1, 8>}, {pipeline_mode = #tpu.pipeline_mode<synchronous>, transform_indices = @transform_9, window_bounds = array<i64: 8, 8>}, {pipeline_mode = #tpu.pipeline_mode<synchronous>, transform_indices = @transform_10, window_bounds = array<i64: 1, 8>}, {transform_indices = @transform_11, window_bounds = array<i64: 1, 8, 128>}]} {
    %c0_i32 = arith.constant 0 : i32
    %0 = arith.cmpi eq, %arg1, %c0_i32 : i32
    %1 = arith.extui %0 : i1 to i32
    %c0_i32_0 = arith.constant 0 : i32
    %2 = arith.cmpi ne, %1, %c0_i32_0 : i32
    scf.if %2 {
      %c0_18 = arith.constant 0 : index
      %c0_19 = arith.constant 0 : index
      %c0_20 = arith.constant 0 : index
      %35 = vector.load %arg2[%c0_18, %c0_19, %c0_20] : memref<1x8x256xf32, #tpu.memory_space<vmem>>, vector<1x8x256xf32>
      %36 = vector.shape_cast %35 : vector<1x8x256xf32> to vector<8x256xf32>
      %c0_21 = arith.constant 0 : index
      %c0_22 = arith.constant 0 : index
      %37 = vector.load %arg3[%c0_21, %c0_22] : memref<8x1xf32, #tpu.memory_space<vmem>>, vector<8x1xf32>
      %c0_23 = arith.constant 0 : index
      %c0_24 = arith.constant 0 : index
      %38 = vector.load %arg4[%c0_23, %c0_24] : memref<8x1xf32, #tpu.memory_space<vmem>>, vector<8x1xf32>
      %39 = tpu.iota {dimensions = array<i32: 0>} : vector<8x1xi32>
      %cst_25 = arith.constant 0.000000e+00 : f32
      %40 = vector.broadcast %cst_25 : f32 to vector<8x1xf32>
      %cst_26 = arith.constant 0.000000e+00 : f32
      %41 = vector.broadcast %cst_26 : f32 to vector<8x1xf32>
      %42 = vector.extract_strided_slice %36 {offsets = [0, 0], sizes = [4, 256], strides = [1, 1]} : vector<8x256xf32> to vector<4x256xf32>
      %43 = vector.shape_cast %42 : vector<4x256xf32> to vector<1x4x256xf32>
      %cst_27 = arith.constant dense<0.000000e+00> : vector<1xf32>
      %44 = vector.multi_reduction <add>, %43, %cst_27 [1, 2] : vector<1x4x256xf32> to vector<1xf32>
      %45 = vector.shape_cast %44 : vector<1xf32> to vector<1x1x1xf32>
      %46 = vector.extract %45[0, 0, 0] : f32 from vector<1x1x1xf32>
      %cst_28 = arith.constant 1.024000e+03 : f32
      %47 = arith.divf %46, %cst_28 : f32
      %48 = vector.broadcast %47 : f32 to vector<4x256xf32>
      %49 = arith.subf %42, %48 : vector<4x256xf32>
      %50 = arith.mulf %49, %49 : vector<4x256xf32>
      %51 = vector.shape_cast %50 : vector<4x256xf32> to vector<1x4x256xf32>
      %cst_29 = arith.constant dense<0.000000e+00> : vector<1xf32>
      %52 = vector.multi_reduction <add>, %51, %cst_29 [1, 2] : vector<1x4x256xf32> to vector<1xf32>
      %53 = vector.shape_cast %52 : vector<1xf32> to vector<1x1x1xf32>
      %54 = vector.extract %53[0, 0, 0] : f32 from vector<1x1x1xf32>
      %cst_30 = arith.constant 1.024000e+03 : f32
      %55 = arith.divf %54, %cst_30 : f32
      %cst_31 = arith.constant 9.99999997E-7 : f32
      %56 = arith.addf %55, %cst_31 : f32
      %57 = math.rsqrt %56 : f32
      %c0_i32_32 = arith.constant 0 : i32
      %58 = vector.broadcast %c0_i32_32 : i32 to vector<8x1xi32>
      %59 = arith.cmpi sge, %39, %58 : vector<8x1xi32>
      %c4_i32 = arith.constant 4 : i32
      %60 = vector.broadcast %c4_i32 : i32 to vector<8x1xi32>
      %61 = arith.cmpi slt, %39, %60 : vector<8x1xi32>
      %62 = arith.andi %59, %61 : vector<8x1xi1>
      %63 = vector.broadcast %57 : f32 to vector<8x1xf32>
      %64 = arith.select %62, %63, %40 : vector<8x1xi1>, vector<8x1xf32>
      %cst_33 = arith.constant 0.000000e+00 : f32
      %65 = arith.subf %cst_33, %47 : f32
      %66 = arith.mulf %65, %57 : f32
      %67 = vector.broadcast %66 : f32 to vector<8x1xf32>
      %68 = arith.select %62, %67, %41 : vector<8x1xi1>, vector<8x1xf32>
      %69 = vector.extract_strided_slice %36 {offsets = [4, 0], sizes = [4, 256], strides = [1, 1]} : vector<8x256xf32> to vector<4x256xf32>
      %70 = vector.shape_cast %69 : vector<4x256xf32> to vector<1x4x256xf32>
      %cst_34 = arith.constant dense<0.000000e+00> : vector<1xf32>
      %71 = vector.multi_reduction <add>, %70, %cst_34 [1, 2] : vector<1x4x256xf32> to vector<1xf32>
      %72 = vector.shape_cast %71 : vector<1xf32> to vector<1x1x1xf32>
      %73 = vector.extract %72[0, 0, 0] : f32 from vector<1x1x1xf32>
      %cst_35 = arith.constant 1.024000e+03 : f32
      %74 = arith.divf %73, %cst_35 : f32
      %75 = vector.broadcast %74 : f32 to vector<4x256xf32>
      %76 = arith.subf %69, %75 : vector<4x256xf32>
      %77 = arith.mulf %76, %76 : vector<4x256xf32>
      %78 = vector.shape_cast %77 : vector<4x256xf32> to vector<1x4x256xf32>
      %cst_36 = arith.constant dense<0.000000e+00> : vector<1xf32>
      %79 = vector.multi_reduction <add>, %78, %cst_36 [1, 2] : vector<1x4x256xf32> to vector<1xf32>
      %80 = vector.shape_cast %79 : vector<1xf32> to vector<1x1x1xf32>
      %81 = vector.extract %80[0, 0, 0] : f32 from vector<1x1x1xf32>
      %cst_37 = arith.constant 1.024000e+03 : f32
      %82 = arith.divf %81, %cst_37 : f32
      %cst_38 = arith.constant 9.99999997E-7 : f32
      %83 = arith.addf %82, %cst_38 : f32
      %84 = math.rsqrt %83 : f32
      %c4_i32_39 = arith.constant 4 : i32
      %85 = vector.broadcast %c4_i32_39 : i32 to vector<8x1xi32>
      %86 = arith.cmpi sge, %39, %85 : vector<8x1xi32>
      %c8_i32 = arith.constant 8 : i32
      %87 = vector.broadcast %c8_i32 : i32 to vector<8x1xi32>
      %88 = arith.cmpi slt, %39, %87 : vector<8x1xi32>
      %89 = arith.andi %86, %88 : vector<8x1xi1>
      %90 = vector.broadcast %84 : f32 to vector<8x1xf32>
      %91 = arith.select %89, %90, %64 : vector<8x1xi1>, vector<8x1xf32>
      %cst_40 = arith.constant 0.000000e+00 : f32
      %92 = arith.subf %cst_40, %74 : f32
      %93 = arith.mulf %92, %84 : f32
      %94 = vector.broadcast %93 : f32 to vector<8x1xf32>
      %95 = arith.select %89, %94, %68 : vector<8x1xi1>, vector<8x1xf32>
      %96 = arith.mulf %91, %37 : vector<8x1xf32>
      %97 = arith.mulf %95, %37 : vector<8x1xf32>
      %98 = arith.addf %97, %38 : vector<8x1xf32>
      %99 = vector.broadcast %96 : vector<8x1xf32> to vector<8x256xf32>
      %100 = arith.mulf %36, %99 : vector<8x256xf32>
      %101 = vector.broadcast %98 : vector<8x1xf32> to vector<8x256xf32>
      %102 = arith.addf %100, %101 : vector<8x256xf32>
      %103 = tpu.transpose %102, [1, 0] : vector<8x256xf32> -> vector<256x8xf32>
      %c0_41 = arith.constant 0 : index
      %c0_42 = arith.constant 0 : index
      %104 = vector.load %arg5[%c0_41, %c0_42] : memref<8x8xf32, #tpu.memory_space<vmem>>, vector<8x8xf32>
      %cst_43 = arith.constant dense<0.000000e+00> : vector<256x8xf32>
      %105 = tpu.matmul %103, %104, %cst_43 {dimension_numbers = #tpu.dot_dimension_numbers<[1], [0], [0], [1], [0, 0, 1, 1], [], []>} : vector<256x8xf32>, vector<8x8xf32>, vector<256x8xf32> -> vector<256x8xf32>
      %c0_44 = arith.constant 0 : index
      %c0_45 = arith.constant 0 : index
      %106 = vector.load %arg6[%c0_44, %c0_45] : memref<1x8xf32, #tpu.memory_space<vmem>>, vector<1x8xf32>
      %107 = vector.broadcast %106 : vector<1x8xf32> to vector<256x8xf32>
      %108 = arith.addf %105, %107 : vector<256x8xf32>
      %c0_46 = arith.constant 0 : index
      %c0_47 = arith.constant 0 : index
      %109 = vector.load %arg9[%c0_46, %c0_47] : memref<8x8xf32, #tpu.memory_space<vmem>>, vector<8x8xf32>
      %cst_48 = arith.constant dense<0.000000e+00> : vector<256x8xf32>
      %110 = tpu.matmul %103, %109, %cst_48 {dimension_numbers = #tpu.dot_dimension_numbers<[1], [0], [0], [1], [0, 0, 1, 1], [], []>} : vector<256x8xf32>, vector<8x8xf32>, vector<256x8xf32> -> vector<256x8xf32>
      %c0_49 = arith.constant 0 : index
      %c0_50 = arith.constant 0 : index
      %111 = vector.load %arg10[%c0_49, %c0_50] : memref<1x8xf32, #tpu.memory_space<vmem>>, vector<1x8xf32>
      %112 = vector.broadcast %111 : vector<1x8xf32> to vector<256x8xf32>
      %113 = arith.addf %110, %112 : vector<256x8xf32>
      %c0_51 = arith.constant 0 : index
      %c0_52 = arith.constant 0 : index
      %114 = vector.load %arg7[%c0_51, %c0_52] : memref<8x8xf32, #tpu.memory_space<vmem>>, vector<8x8xf32>
      %cst_53 = arith.constant dense<0.000000e+00> : vector<8x256xf32>
      %115 = tpu.matmul %114, %102, %cst_53 {dimension_numbers = #tpu.dot_dimension_numbers<[1], [0], [0], [1], [0, 0, 1, 1], [], []>} : vector<8x8xf32>, vector<8x256xf32>, vector<8x256xf32> -> vector<8x256xf32>
      %c0_54 = arith.constant 0 : index
      %c0_55 = arith.constant 0 : index
      %116 = vector.load %arg8[%c0_54, %c0_55] : memref<8x1xf32, #tpu.memory_space<vmem>>, vector<8x1xf32>
      %117 = vector.broadcast %116 : vector<8x1xf32> to vector<8x256xf32>
      %118 = arith.addf %115, %117 : vector<8x256xf32>
      %119 = arith.truncf %108 : vector<256x8xf32> to vector<256x8xbf16>
      %c0_56 = arith.constant 0 : index
      %c0_57 = arith.constant 0 : index
      %120 = vector.load %arg14[%c0_56, %c0_57] : memref<256x8xbf16, #tpu.memory_space<vmem>>, vector<256x8xbf16>
      tpu.vector_store %arg14[%c0_56, %c0_57], %119 {strides = array<i32>} : memref<256x8xbf16, #tpu.memory_space<vmem>>, vector<256x8xbf16>,
      %121 = arith.truncf %113 : vector<256x8xf32> to vector<256x8xbf16>
      %c0_58 = arith.constant 0 : index
      %c0_59 = arith.constant 0 : index
      %122 = vector.load %arg16[%c0_58, %c0_59] : memref<256x8xbf16, #tpu.memory_space<vmem>>, vector<256x8xbf16>
      tpu.vector_store %arg16[%c0_58, %c0_59], %121 {strides = array<i32>} : memref<256x8xbf16, #tpu.memory_space<vmem>>, vector<256x8xbf16>,
      %123 = arith.truncf %118 : vector<8x256xf32> to vector<8x256xbf16>
      %c0_60 = arith.constant 0 : index
      %c0_61 = arith.constant 0 : index
      %124 = vector.load %arg15[%c0_60, %c0_61] : memref<8x256xbf16, #tpu.memory_space<vmem>>, vector<8x256xbf16>
      tpu.vector_store %arg15[%c0_60, %c0_61], %123 {strides = array<i32>} : memref<8x256xbf16, #tpu.memory_space<vmem>>, vector<8x256xbf16>,
    } else {
    }
    %c128_i32 = arith.constant 128 : i32
    %3 = arith.muli %arg1, %c128_i32 : i32
    %4 = tpu.assume_multiple %3, 128 : i32
    %5 = arith.index_cast %4 : i32 to index
    %c0 = arith.constant 0 : index
    %6 = vector.load %arg14[%5, %c0] : memref<256x8xbf16, #tpu.memory_space<vmem>>, vector<128x8xbf16>
    %c0_1 = arith.constant 0 : index
    %c0_2 = arith.constant 0 : index
    %7 = vector.load %arg15[%c0_1, %c0_2] : memref<8x256xbf16, #tpu.memory_space<vmem>>, vector<8x256xbf16>
    %cst = arith.constant dense<0.000000e+00> : vector<128x256xf32>
    %8 = tpu.matmul %6, %7, %cst {dimension_numbers = #tpu.dot_dimension_numbers<[1], [0], [0], [1], [0, 0, 1, 1], [], []>} : vector<128x8xbf16>, vector<8x256xbf16>, vector<128x256xf32> -> vector<128x256xf32>
    %cst_3 = arith.constant dense<0xFF800000> : vector<128xf32>
    %9 = vector.multi_reduction <maximumf>, %8, %cst_3 [1] : vector<128x256xf32> to vector<128xf32>
    %10 = vector.shape_cast %9 : vector<128xf32> to vector<128x1xf32>
    %11 = vector.broadcast %10 : vector<128x1xf32> to vector<128x256xf32>
    %12 = arith.subf %8, %11 : vector<128x256xf32>
    %13 = math.exp %12 : vector<128x256xf32>
    %cst_4 = arith.constant dense<0.000000e+00> : vector<128xf32>
    %14 = vector.multi_reduction <add>, %13, %cst_4 [1] : vector<128x256xf32> to vector<128xf32>
    %15 = vector.shape_cast %14 : vector<128xf32> to vector<128x1xf32>
    %16 = tpu.reciprocal %15 {approx = true} : vector<128x1xf32> -> vector<128x1xf32>
    %17 = vector.broadcast %16 : vector<128x1xf32> to vector<128x256xf32>
    %18 = arith.mulf %13, %17 : vector<128x256xf32>
    %19 = arith.truncf %18 : vector<128x256xf32> to vector<128x256xbf16>
    %c0_5 = arith.constant 0 : index
    %c0_6 = arith.constant 0 : index
    %20 = vector.load %arg16[%c0_5, %c0_6] : memref<256x8xbf16, #tpu.memory_space<vmem>>, vector<256x8xbf16>
    %cst_7 = arith.constant dense<0.000000e+00> : vector<128x8xf32>
    %21 = tpu.matmul %19, %20, %cst_7 {dimension_numbers = #tpu.dot_dimension_numbers<[1], [0], [0], [1], [0, 0, 1, 1], [], []>} : vector<128x256xbf16>, vector<256x8xbf16>, vector<128x8xf32> -> vector<128x8xf32>
    %c0_8 = arith.constant 0 : index
    %c0_9 = arith.constant 0 : index
    %22 = vector.load %arg11[%c0_8, %c0_9] : memref<8x8xf32, #tpu.memory_space<vmem>>, vector<8x8xf32>
    %cst_10 = arith.constant dense<0.000000e+00> : vector<128x8xf32>
    %23 = tpu.matmul %21, %22, %cst_10 {dimension_numbers = #tpu.dot_dimension_numbers<[1], [0], [0], [1], [0, 0, 1, 1], [], []>} : vector<128x8xf32>, vector<8x8xf32>, vector<128x8xf32> -> vector<128x8xf32>
    %c0_11 = arith.constant 0 : index
    %c0_12 = arith.constant 0 : index
    %24 = vector.load %arg12[%c0_11, %c0_12] : memref<1x8xf32, #tpu.memory_space<vmem>>, vector<1x8xf32>
    %25 = vector.broadcast %24 : vector<1x8xf32> to vector<128x8xf32>
    %26 = arith.addf %23, %25 : vector<128x8xf32>
    %c0_13 = arith.constant 0 : index
    %c0_14 = arith.constant 0 : index
    %27 = arith.index_cast %4 : i32 to index
    %28 = vector.load %arg2[%c0_13, %c0_14, %27] : memref<1x8x256xf32, #tpu.memory_space<vmem>>, vector<1x8x128xf32>
    %29 = vector.shape_cast %28 : vector<1x8x128xf32> to vector<8x128xf32>
    %30 = tpu.transpose %26, [1, 0] : vector<128x8xf32> -> vector<8x128xf32>
    %31 = arith.addf %29, %30 : vector<8x128xf32>
    %c0_15 = arith.constant 0 : index
    %c0_16 = arith.constant 0 : index
    %c0_17 = arith.constant 0 : index
    %32 = vector.load %arg13[%c0_15, %c0_16, %c0_17] : memref<1x8x128xf32, #tpu.memory_space<vmem>>, vector<1x8x128xf32>
    %33 = vector.shape_cast %32 : vector<1x8x128xf32> to vector<8x128xf32>
    %34 = vector.shape_cast %31 : vector<8x128xf32> to vector<1x8x128xf32>
    tpu.vector_store %arg13[%c0_15, %c0_16, %c0_17], %34 {strides = array<i32>} : memref<1x8x128xf32, #tpu.memory_space<vmem>>, vector<1x8x128xf32>,
    return
  }
  func.func @transform_0(%arg0: i32, %arg1: i32) -> (i32, i32, i32) {
    %c0_i32 = arith.constant 0 : i32
    %c0_i32_0 = arith.constant 0 : i32
    %c0_i32_1 = arith.constant 0 : i32
    return %arg0, %c0_i32, %c0_i32_0 : i32, i32, i32
  }
  func.func @transform_1(%arg0: i32, %arg1: i32) -> (i32, i32) {
    %c0_i32 = arith.constant 0 : i32
    %c0_i32_0 = arith.constant 0 : i32
    %c0_i32_1 = arith.constant 0 : i32
    return %c0_i32, %c0_i32_0 : i32, i32
  }
  func.func @transform_2(%arg0: i32, %arg1: i32) -> (i32, i32) {
    %c0_i32 = arith.constant 0 : i32
    %c0_i32_0 = arith.constant 0 : i32
    %c0_i32_1 = arith.constant 0 : i32
    return %c0_i32, %c0_i32_0 : i32, i32
  }
  func.func @transform_3(%arg0: i32, %arg1: i32) -> (i32, i32) {
    %c0_i32 = arith.constant 0 : i32
    %c0_i32_0 = arith.constant 0 : i32
    %c0_i32_1 = arith.constant 0 : i32
    return %c0_i32, %c0_i32_0 : i32, i32
  }
  func.func @transform_4(%arg0: i32, %arg1: i32) -> (i32, i32) {
    %c0_i32 = arith.constant 0 : i32
    %c0_i32_0 = arith.constant 0 : i32
    %c0_i32_1 = arith.constant 0 : i32
    return %c0_i32, %c0_i32_0 : i32, i32
  }
  func.func @transform_5(%arg0: i32, %arg1: i32) -> (i32, i32) {
    %c0_i32 = arith.constant 0 : i32
    %c0_i32_0 = arith.constant 0 : i32
    %c0_i32_1 = arith.constant 0 : i32
    return %c0_i32, %c0_i32_0 : i32, i32
  }
  func.func @transform_6(%arg0: i32, %arg1: i32) -> (i32, i32) {
    %c0_i32 = arith.constant 0 : i32
    %c0_i32_0 = arith.constant 0 : i32
    %c0_i32_1 = arith.constant 0 : i32
    return %c0_i32, %c0_i32_0 : i32, i32
  }
  func.func @transform_7(%arg0: i32, %arg1: i32) -> (i32, i32) {
    %c0_i32 = arith.constant 0 : i32
    %c0_i32_0 = arith.constant 0 : i32
    %c0_i32_1 = arith.constant 0 : i32
    return %c0_i32, %c0_i32_0 : i32, i32
  }
  func.func @transform_8(%arg0: i32, %arg1: i32) -> (i32, i32) {
    %c0_i32 = arith.constant 0 : i32
    %c0_i32_0 = arith.constant 0 : i32
    %c0_i32_1 = arith.constant 0 : i32
    return %c0_i32, %c0_i32_0 : i32, i32
  }
  func.func @transform_9(%arg0: i32, %arg1: i32) -> (i32, i32) {
    %c0_i32 = arith.constant 0 : i32
    %c0_i32_0 = arith.constant 0 : i32
    %c0_i32_1 = arith.constant 0 : i32
    return %c0_i32, %c0_i32_0 : i32, i32
  }
  func.func @transform_10(%arg0: i32, %arg1: i32) -> (i32, i32) {
    %c0_i32 = arith.constant 0 : i32
    %c0_i32_0 = arith.constant 0 : i32
    %c0_i32_1 = arith.constant 0 : i32
    return %c0_i32, %c0_i32_0 : i32, i32
  }
  func.func @transform_11(%arg0: i32, %arg1: i32) -> (i32, i32, i32) {
    %c0_i32 = arith.constant 0 : i32
    %c0_i32_0 = arith.constant 0 : i32
    return %arg0, %c0_i32, %arg1 : i32, i32, i32
  }
}

</mosaic_0001>

<llo_original>
// kernel: attn_block_forward.1
$region0: #{attn_block_forward.1}
  #allocation0 [shape = 'u32[]', space=smem, size = 0x4, offset = 0x4, fixed_abs, tag = 'smem constant byte address 0x4 - core index']
  #allocation1 [shape = 'u32[144,128]{1,0:T(1,128)}', space=vmem, size = 0x12000, scoped, tag = 'internal scratch']
  #allocation2 [shape = 'bf16[256,8]{1,0:T(16,128)(2,1)}', space=vmem, size = 0x10000, scoped, tag = 'scratch operand']
  #allocation3 [shape = 'bf16[8,256]{1,0:T(8,128)(2,1)}', space=vmem, size = 0x1000, scoped, tag = 'scratch operand']
  #allocation4 [shape = 'bf16[256,8]{1,0:T(16,128)(2,1)}', space=vmem, size = 0x10000, scoped, tag = 'scratch operand']
  %s0 = inlined_call_operand.vmem [shape: f32[2,8,256], index: 0, kind: input, shape index: {}]
  %s1 = inlined_call_operand.vmem [shape: f32[8,1], index: 1, kind: input, shape index: {}]
  %s2 = inlined_call_operand.vmem [shape: f32[8,1], index: 2, kind: input, shape index: {}]
  %s3 = inlined_call_operand.vmem [shape: f32[8,8], index: 3, kind: input, shape index: {}]
  %s4 = inlined_call_operand.vmem [shape: f32[1,8], index: 4, kind: input, shape index: {}]
  %s5 = inlined_call_operand.vmem [shape: f32[8,8], index: 5, kind: input, shape index: {}]
  %s6 = inlined_call_operand.vmem [shape: f32[8,1], index: 6, kind: input, shape index: {}]
  %s7 = inlined_call_operand.vmem [shape: f32[8,8], index: 7, kind: input, shape index: {}]
  %s8 = inlined_call_operand.vmem [shape: f32[1,8], index: 8, kind: input, shape index: {}]
  %s9 = inlined_call_operand.vmem [shape: f32[8,8], index: 9, kind: input, shape index: {}]
  %s10 = inlined_call_operand.vmem [shape: f32[1,8], index: 10, kind: input, shape index: {}]
  %s11 = inlined_call_operand.vmem [shape: f32[2,8,256], index: 11, kind: output, shape index: {}]
  %s12 = sld [smem:[#allocation0]]
  $region81: #{attn_block_forward.1} parent=0
    _
  %s14 = ssub.s32 1, %s12
  %s15 = scalar_select 0, %s14, %s12
  loop: start=0, step=1, limit=6
  $region2: #{attn_block_forward.1} parent=0 // loop_pre_header
    _
  $region3: #{attn_block_forward.1} parent=0 // loop_header
    %s17 = sphi 0, %s21
    %p18 = scmp.ge.s32.totalorder %s17, 6
    %s24 = sphi 0, %s36
    %s25 = sphi 0, %s32
    %s26 = sphi 0, %s24
    %s27 = sphi 0, %s25
    %s28 = sphi 0, %s26
    %s29 = sphi 0, %s27
    %s39 = sphi 0, %s41
    %s42 = sphi 0, %s39
    %s43 = sphi 0, %s42
    %s59 = sphi 0, %s43
    %s63 = sphi 0, %s63
    %s65 = sphi 0, %s63
    %s66 = sphi 0, %s65
    %s80 = sphi 0, %s66
    %s84 = sphi 0, %s84
    %s86 = sphi 0, %s84
    %s87 = sphi 0, %s86
    %s101 = sphi 0, %s87
    %s105 = sphi 0, %s105
    %s107 = sphi 0, %s105
    %s108 = sphi 0, %s107
    %s122 = sphi 0, %s108
    %s126 = sphi 0, %s126
    %s128 = sphi 0, %s126
    %s129 = sphi 0, %s128
    %s143 = sphi 0, %s129
    %s147 = sphi 0, %s147
    %s149 = sphi 0, %s147
    %s150 = sphi 0, %s149
    %s164 = sphi 0, %s150
    %s168 = sphi 0, %s168
    %s170 = sphi 0, %s168
    %s171 = sphi 0, %s170
    %s185 = sphi 0, %s171
    %s189 = sphi 0, %s189
    %s191 = sphi 0, %s189
    %s192 = sphi 0, %s191
    %s206 = sphi 0, %s192
    %s210 = sphi 0, %s210
    %s212 = sphi 0, %s210
    %s213 = sphi 0, %s212
    %s227 = sphi 0, %s213
    %s231 = sphi 0, %s231
    %s233 = sphi 0, %s231
    %s234 = sphi 0, %s233
    %s248 = sphi 0, %s234
    %s252 = sphi 0, %s252
    %s254 = sphi 0, %s252
    %s255 = sphi 0, %s254
    %s269 = sphi 0, %s255
    %s277 = sphi 0, %s279
    %s280 = sphi 0, %s277
    %s281 = sphi 0, %s280
    %s297 = sphi 0, %s281
  $region4: #{attn_block_forward.1} parent=0 // loop_header_branch
    %20 = sbr.rel (%p18) target = $region8
  $region5: #{attn_block_forward.1} parent=0 // loop_body
    %s22 = ssub.s32 %s17, 1
    %s23 = ssub.s32 %s17, 2
    %s30 = sadd.s32 1, %s25
    %p31 = scmp.ge.s32.totalorder %s30, 2
    %s32 = scalar_select %p31, 0, %s30
    %s33 = sadd.s32 1, %s24
    %s34 = scalar_select %p31, %s33, %s24
    %p35 = scmp.ge.s32.totalorder %s34, 2
    %s36 = scalar_select %p35, 0, %s34
    %s37 = ssub.s32 %s24, %s36
    %p38 = scmp.eq.s32.totalorder %s37, 0
    %s40 = sadd.s32 %s39, 1
    %s41 = scalar_select %p38, %s39, %s40
    %p44 = pneg %p38
    %p45 = scmp.eq.s32.totalorder %s17, 3
    %p46 = por %p44, %p45
    %p47 = scmp.ne.s32.totalorder %s39, %s42
    %p48 = scmp.eq.s32.totalorder %s17, 0
    %p49 = por %p47, %p48
    %p50 = scmp.ne.s32.totalorder %s39, %s42
    %p51 = scmp.eq.s32.totalorder %s22, 3
    %p52 = por %p50, %p51
    %p53 = scmp.ne.s32.totalorder %s42, %s43
    %p54 = scmp.eq.s32.totalorder %s22, 0
    %p55 = por %p53, %p54
    %p56 = scmp.ne.s32.totalorder %s42, %s43
    %p57 = scmp.eq.s32.totalorder %s23, 3
    %p58 = por %p56, %p57
    %p60 = scmp.ne.s32.totalorder %s43, %s59
    %p61 = scmp.eq.s32.totalorder %s23, 0
    %p62 = por %p60, %p61
    %s64 = sadd.s32 %s63, 1
    %p67 = scmp.eq.s32.totalorder %s17, 3
    %p68 = scmp.ne.s32.totalorder %s63, %s65
    %p69 = scmp.eq.s32.totalorder %s17, 0
    %p70 = por %p68, %p69
    %p71 = scmp.ne.s32.totalorder %s63, %s65
    %p72 = scmp.eq.s32.totalorder %s22, 3
    %p73 = por %p71, %p72
    %p74 = scmp.ne.s32.totalorder %s65, %s66
    %p75 = scmp.eq.s32.totalorder %s22, 0
    %p76 = por %p74, %p75
    %p77 = scmp.ne.s32.totalorder %s65, %s66
    %p78 = scmp.eq.s32.totalorder %s23, 3
    %p79 = por %p77, %p78
    %p81 = scmp.ne.s32.totalorder %s66, %s80
    %p82 = scmp.eq.s32.totalorder %s23, 0
    %p83 = por %p81, %p82
    %s85 = sadd.s32 %s84, 1
    %p88 = scmp.eq.s32.totalorder %s17, 3
    %p89 = scmp.ne.s32.totalorder %s84, %s86
    %p90 = scmp.eq.s32.totalorder %s17, 0
    %p91 = por %p89, %p90
    %p92 = scmp.ne.s32.totalorder %s84, %s86
    %p93 = scmp.eq.s32.totalorder %s22, 3
    %p94 = por %p92, %p93
    %p95 = scmp.ne.s32.totalorder %s86, %s87
    %p96 = scmp.eq.s32.totalorder %s22, 0
    %p97 = por %p95, %p96
    %p98 = scmp.ne.s32.totalorder %s86, %s87
    %p99 = scmp.eq.s32.totalorder %s23, 3
    %p100 = por %p98, %p99
    %p102 = scmp.ne.s32.totalorder %s87, %s101
    %p103 = scmp.eq.s32.totalorder %s23, 0
    %p104 = por %p102, %p103
    %s106 = sadd.s32 %s105, 1
    %p109 = scmp.eq.s32.totalorder %s17, 3
    %p110 = scmp.ne.s32.totalorder %s105, %s107
    %p111 = scmp.eq.s32.totalorder %s17, 0
    %p112 = por %p110, %p111
    %p113 = scmp.ne.s32.totalorder %s105, %s107
    %p114 = scmp.eq.s32.totalorder %s22, 3
    %p115 = por %p113, %p114
    %p116 = scmp.ne.s32.totalorder %s107, %s108
    %p117 = scmp.eq.s32.totalorder %s22, 0
    %p118 = por %p116, %p117
    %p119 = scmp.ne.s32.totalorder %s107, %s108
    %p120 = scmp.eq.s32.totalorder %s23, 3
    %p121 = por %p119, %p120
    %p123 = scmp.ne.s32.totalorder %s108, %s122
    %p124 = scmp.eq.s32.totalorder %s23, 0
    %p125 = por %p123, %p124
    %s127 = sadd.s32 %s126, 1
    %p130 = scmp.eq.s32.totalorder %s17, 3
    %p131 = scmp.ne.s32.totalorder %s126, %s128
    %p132 = scmp.eq.s32.totalorder %s17, 0
    %p133 = por %p131, %p132
    %p134 = scmp.ne.s32.totalorder %s126, %s128
    %p135 = scmp.eq.s32.totalorder %s22, 3
    %p136 = por %p134, %p135
    %p137 = scmp.ne.s32.totalorder %s128, %s129
    %p138 = scmp.eq.s32.totalorder %s22, 0
    %p139 = por %p137, %p138
    %p140 = scmp.ne.s32.totalorder %s128, %s129
    %p141 = scmp.eq.s32.totalorder %s23, 3
    %p142 = por %p140, %p141
    %p144 = scmp.ne.s32.totalorder %s129, %s143
    %p145 = scmp.eq.s32.totalorder %s23, 0
    %p146 = por %p144, %p145
    %s148 = sadd.s32 %s147, 1
    %p151 = scmp.eq.s32.totalorder %s17, 3
    %p152 = scmp.ne.s32.totalorder %s147, %s149
    %p153 = scmp.eq.s32.totalorder %s17, 0
    %p154 = por %p152, %p153
    %p155 = scmp.ne.s32.totalorder %s147, %s149
    %p156 = scmp.eq.s32.totalorder %s22, 3
    %p157 = por %p155, %p156
    %p158 = scmp.ne.s32.totalorder %s149, %s150
    %p159 = scmp.eq.s32.totalorder %s22, 0
    %p160 = por %p158, %p159
    %p161 = scmp.ne.s32.totalorder %s149, %s150
    %p162 = scmp.eq.s32.totalorder %s23, 3
    %p163 = por %p161, %p162
    %p165 = scmp.ne.s32.totalorder %s150, %s164
    %p166 = scmp.eq.s32.totalorder %s23, 0
    %p167 = por %p165, %p166
    %s169 = sadd.s32 %s168, 1
    %p172 = scmp.eq.s32.totalorder %s17, 3
    %p173 = scmp.ne.s32.totalorder %s168, %s170
    %p174 = scmp.eq.s32.totalorder %s17, 0
    %p175 = por %p173, %p174
    %p176 = scmp.ne.s32.totalorder %s168, %s170
    %p177 = scmp.eq.s32.totalorder %s22, 3
    %p178 = por %p176, %p177
    %p179 = scmp.ne.s32.totalorder %s170, %s171
    %p180 = scmp.eq.s32.totalorder %s22, 0
    %p181 = por %p179, %p180
    %p182 = scmp.ne.s32.totalorder %s170, %s171
    %p183 = scmp.eq.s32.totalorder %s23, 3
    %p184 = por %p182, %p183
    %p186 = scmp.ne.s32.totalorder %s171, %s185
    %p187 = scmp.eq.s32.totalorder %s23, 0
    %p188 = por %p186, %p187
    %s190 = sadd.s32 %s189, 1
    %p193 = scmp.eq.s32.totalorder %s17, 3
    %p194 = scmp.ne.s32.totalorder %s189, %s191
    %p195 = scmp.eq.s32.totalorder %s17, 0
    %p196 = por %p194, %p195
    %p197 = scmp.ne.s32.totalorder %s189, %s191
    %p198 = scmp.eq.s32.totalorder %s22, 3
    %p199 = por %p197, %p198
    %p200 = scmp.ne.s32.totalorder %s191, %s192
    %p201 = scmp.eq.s32.totalorder %s22, 0
    %p202 = por %p200, %p201
    %p203 = scmp.ne.s32.totalorder %s191, %s192
    %p204 = scmp.eq.s32.totalorder %s23, 3
    %p205 = por %p203, %p204
    %p207 = scmp.ne.s32.totalorder %s192, %s206
    %p208 = scmp.eq.s32.totalorder %s23, 0
    %p209 = por %p207, %p208
    %s211 = sadd.s32 %s210, 1
    %p214 = scmp.eq.s32.totalorder %s17, 3
    %p215 = scmp.ne.s32.totalorder %s210, %s212
    %p216 = scmp.eq.s32.totalorder %s17, 0
    %p217 = por %p215, %p216
    %p218 = scmp.ne.s32.totalorder %s210, %s212
    %p219 = scmp.eq.s32.totalorder %s22, 3
    %p220 = por %p218, %p219
    %p221 = scmp.ne.s32.totalorder %s212, %s213
    %p222 = scmp.eq.s32.totalorder %s22, 0
    %p223 = por %p221, %p222
    %p224 = scmp.ne.s32.totalorder %s212, %s213
    %p225 = scmp.eq.s32.totalorder %s23, 3
    %p226 = por %p224, %p225
    %p228 = scmp.ne.s32.totalorder %s213, %s227
    %p229 = scmp.eq.s32.totalorder %s23, 0
    %p230 = por %p228, %p229
    %s232 = sadd.s32 %s231, 1
    %p235 = scmp.eq.s32.totalorder %s17, 3
    %p236 = scmp.ne.s32.totalorder %s231, %s233
    %p237 = scmp.eq.s32.totalorder %s17, 0
    %p238 = por %p236, %p237
    %p239 = scmp.ne.s32.totalorder %s231, %s233
    %p240 = scmp.eq.s32.totalorder %s22, 3
    %p241 = por %p239, %p240
    %p242 = scmp.ne.s32.totalorder %s233, %s234
    %p243 = scmp.eq.s32.totalorder %s22, 0
    %p244 = por %p242, %p243
    %p245 = scmp.ne.s32.totalorder %s233, %s234
    %p246 = scmp.eq.s32.totalorder %s23, 3
    %p247 = por %p245, %p246
    %p249 = scmp.ne.s32.totalorder %s234, %s248
    %p250 = scmp.eq.s32.totalorder %s23, 0
    %p251 = por %p249, %p250
    %s253 = sadd.s32 %s252, 1
    %p256 = scmp.eq.s32.totalorder %s17, 3
    %p257 = scmp.ne.s32.totalorder %s252, %s254
    %p258 = scmp.eq.s32.totalorder %s17, 0
    %p259 = por %p257, %p258
    %p260 = scmp.ne.s32.totalorder %s252, %s254
    %p261 = scmp.eq.s32.totalorder %s22, 3
    %p262 = por %p260, %p261
    %p263 = scmp.ne.s32.totalorder %s254, %s255
    %p264 = scmp.eq.s32.totalorder %s22, 0
    %p265 = por %p263, %p264
    %p266 = scmp.ne.s32.totalorder %s254, %s255
    %p267 = scmp.eq.s32.totalorder %s23, 3
    %p268 = por %p266, %p267
    %p270 = scmp.ne.s32.totalorder %s255, %s269
    %p271 = scmp.eq.s32.totalorder %s23, 0
    %p272 = por %p270, %p271
    %s273 = ssub.s32 %s24, %s36
    %s274 = ssub.s32 %s25, %s32
    %s275 = sor.u32 %s273, %s274
    %p276 = scmp.eq.s32.totalorder %s275, 0
    %s278 = sadd.s32 %s277, 1
    %s279 = scalar_select %p276, %s277, %s278
    %p282 = pneg %p276
    %p283 = scmp.eq.s32.totalorder %s17, 3
    %p284 = por %p282, %p283
    %p285 = scmp.ne.s32.totalorder %s277, %s280
    %p286 = scmp.eq.s32.totalorder %s17, 0
    %p287 = por %p285, %p286
    %p288 = scmp.ne.s32.totalorder %s277, %s280
    %p289 = scmp.eq.s32.totalorder %s22, 3
    %p290 = por %p288, %p289
    %p291 = scmp.ne.s32.totalorder %s280, %s281
    %p292 = scmp.eq.s32.totalorder %s22, 0
    %p293 = por %p291, %p292
    %p294 = scmp.ne.s32.totalorder %s280, %s281
    %p295 = scmp.eq.s32.totalorder %s23, 3
    %p296 = por %p294, %p295
    %p298 = scmp.ne.s32.totalorder %s281, %s297
    %p299 = scmp.eq.s32.totalorder %s23, 0
    %p300 = por %p298, %p299
    %p301 = scmp.le.s32.totalorder 1, %s17
    %p302 = scmp.lt.s32.totalorder %s17, 5
    %p303 = pnand %p301, %p302
    %p304 = pneg %p303
    // Predicated region
    $region9: #{attn_block_forward.1} parent=5 // pred_check
      _
    $region10: #{attn_block_forward.1} parent=5 // pred_check_branch
      %306 = sbr.rel (%p303) target = $region12
    $region11: #{attn_block_forward.1} parent=5 // pred_region
      %s307 = ssub.s32 %s17, 1
      // Predicated region
      $region13: #{attn_block_forward.1} parent=11 // pred_check
        %p308 = pneg %p76
      $region14: #{attn_block_forward.1} parent=11 // pred_check_branch
        %310 = sbr.rel (%p308) target = $region16
      $region15: #{attn_block_forward.1} parent=11 // pred_region
        _
      $region16: #{attn_block_forward.1} parent=11 // pred_fallthru
        _
      // Predicated region
      $region17: #{attn_block_forward.1} parent=11 // pred_check
        %p311 = pneg %p97
      $region18: #{attn_block_forward.1} parent=11 // pred_check_branch
        %313 = sbr.rel (%p311) target = $region20
      $region19: #{attn_block_forward.1} parent=11 // pred_region
        _
      $region20: #{attn_block_forward.1} parent=11 // pred_fallthru
        _
      // Predicated region
      $region21: #{attn_block_forward.1} parent=11 // pred_check
        %p314 = pneg %p118
      $region22: #{attn_block_forward.1} parent=11 // pred_check_branch
        %316 = sbr.rel (%p314) target = $region24
      $region23: #{attn_block_forward.1} parent=11 // pred_region
        _
      $region24: #{attn_block_forward.1} parent=11 // pred_fallthru
        _
      // Predicated region
      $region25: #{attn_block_forward.1} parent=11 // pred_check
        %p317 = pneg %p139
      $region26: #{attn_block_forward.1} parent=11 // pred_check_branch
        %319 = sbr.rel (%p317) target = $region28
      $region27: #{attn_block_forward.1} parent=11 // pred_region
        _
      $region28: #{attn_block_forward.1} parent=11 // pred_fallthru
        _
      // Predicated region
      $region29: #{attn_block_forward.1} parent=11 // pred_check
        %p320 = pneg %p160
      $region30: #{attn_block_forward.1} parent=11 // pred_check_branch
        %322 = sbr.rel (%p320) target = $region32
      $region31: #{attn_block_forward.1} parent=11 // pred_region
        _
      $region32: #{attn_block_forward.1} parent=11 // pred_fallthru
        _
      // Predicated region
      $region33: #{attn_block_forward.1} parent=11 // pred_check
        %p323 = pneg %p181
      $region34: #{attn_block_forward.1} parent=11 // pred_check_branch
        %325 = sbr.rel (%p323) target = $region36
      $region35: #{attn_block_forward.1} parent=11 // pred_region
        _
      $region36: #{attn_block_forward.1} parent=11 // pred_fallthru
        _
      // Predicated region
      $region37: #{attn_block_forward.1} parent=11 // pred_check
        %p326 = pneg %p202
      $region38: #{attn_block_forward.1} parent=11 // pred_check_branch
        %328 = sbr.rel (%p326) target = $region40
      $region39: #{attn_block_forward.1} parent=11 // pred_region
        _
      $region40: #{attn_block_forward.1} parent=11 // pred_fallthru
        _
      // Predicated region
      $region41: #{attn_block_forward.1} parent=11 // pred_check
        %p329 = pneg %p223
      $region42: #{attn_block_forward.1} parent=11 // pred_check_branch
        %331 = sbr.rel (%p329) target = $region44
      $region43: #{attn_block_forward.1} parent=11 // pred_region
        _
      $region44: #{attn_block_forward.1} parent=11 // pred_fallthru
        _
      // Predicated region
      $region45: #{attn_block_forward.1} parent=11 // pred_check
        %p332 = pneg %p244
      $region46: #{attn_block_forward.1} parent=11 // pred_check_branch
        %334 = sbr.rel (%p332) target = $region48
      $region47: #{attn_block_forward.1} parent=11 // pred_region
        _
      $region48: #{attn_block_forward.1} parent=11 // pred_fallthru
        _
      // Predicated region
      $region49: #{attn_block_forward.1} parent=11 // pred_check
        %p335 = pneg %p265
      $region50: #{attn_block_forward.1} parent=11 // pred_check_branch
        %337 = sbr.rel (%p335) target = $region52
      $region51: #{attn_block_forward.1} parent=11 // pred_region
        _
      $region52: #{attn_block_forward.1} parent=11 // pred_fallthru
        _
    $region12: #{attn_block_forward.1} parent=5 // pred_fallthru
      _
    %p338 = scmp.lt.s32.totalorder %s17, 4
    // Predicated region
    $region53: #{attn_block_forward.1} parent=5 // pred_check
      %p339 = pneg %p338
    $region54: #{attn_block_forward.1} parent=5 // pred_check_branch
      %341 = sbr.rel (%p339) target = $region56
    $region55: #{attn_block_forward.1} parent=5 // pred_region
      // Predicated region
      $region57: #{attn_block_forward.1} parent=55 // pred_check
        %p342 = pneg %p49
      $region58: #{attn_block_forward.1} parent=55 // pred_check_branch
        %344 = sbr.rel (%p342) target = $region60
      $region59: #{attn_block_forward.1} parent=55 // pred_region
        %p345 = scmp.lt.s32.totalorder %s24, 1
        %s346 = scalar_select %p345, %s24, 1
        %s347 = smul.addr %s346, 2
        %s348 = smul.addr %s347, 8
        %s349 = scalar_lea.vmem %s0, %s348
      $region60: #{attn_block_forward.1} parent=55 // pred_fallthru
        _
    $region56: #{attn_block_forward.1} parent=5 // pred_fallthru
      _
    %p350 = scmp.le.s32.totalorder 1, %s17
    %p351 = scmp.lt.s32.totalorder %s17, 5
    %p352 = pnand %p350, %p351
    %p353 = pneg %p352
    // Predicated region
    $region61: #{attn_block_forward.1} parent=5 // pred_check
      _
    $region62: #{attn_block_forward.1} parent=5 // pred_check_branch
      %355 = sbr.rel (%p352) target = $region64
    $region63: #{attn_block_forward.1} parent=5 // pred_region
      %s356 = ssub.s32 %s17, 1
      %p357 = scmp.lt.s32.totalorder %s26, 1
      %s358 = scalar_select %p357, %s26, 1
      %s359 = smul.addr %s358, 2
      %s360 = smul.addr %s359, 8
      %s361 = scalar_lea.vmem %s0, %s360
      %p362 = pneg %p55
      %p363 = pneg %p52
      %p364 = pneg %p76
      %p365 = pneg %p73
      %p366 = pneg %p97
      %p367 = pneg %p94
      %p368 = pneg %p118
      %p369 = pneg %p115
      %p370 = pneg %p139
      %p371 = pneg %p136
      %p372 = pneg %p160
      %p373 = pneg %p157
      %p374 = pneg %p181
      %p375 = pneg %p178
      %p376 = pneg %p202
      %p377 = pneg %p199
      %p378 = pneg %p223
      %p379 = pneg %p220
      %p380 = pneg %p244
      %p381 = pneg %p241
      %p382 = pneg %p265
      %p383 = pneg %p262
      %p384 = pneg %p293
      %p385 = pneg %p290
      %p386 = scmp.lt.s32.totalorder %s26, 1
      %s387 = scalar_select %p386, %s26, 1
      %p388 = scmp.lt.s32.totalorder %s27, 1
      %s389 = scalar_select %p388, %s27, 1
      %s390 = smul.addr %s387, 2
      %s391 = sadd.s32 %s389, %s390
      %s392 = smul.addr %s391, 8
      %s393 = scalar_lea.vmem %s11, %s392
      %p394 = scmp.lt.s32.totalorder %s26, 1
      %s395 = scalar_select %p394, %s26, 1
      %s396 = smul.addr %s395, 2
      %s397 = smul.addr %s396, 8
      %s398 = scalar_lea.vmem %s0, %s397
      %p399 = scmp.lt.s32.totalorder %s26, 1
      %s400 = scalar_select %p399, %s26, 1
      %p401 = scmp.lt.s32.totalorder %s27, 1
      %s402 = scalar_select %p401, %s27, 1
      %s403 = smul.addr %s400, 2
      %s404 = sadd.s32 %s402, %s403
      %s405 = smul.addr %s404, 8
      %s406 = scalar_lea.vmem %s11, %s405
      %p408 = scmp.eq.s32.totalorder %s27, 0
      // Predicated region
      $region65: #{attn_block_forward.1} parent=63 // pred_check
        %p409 = pneg %p408
      $region66: #{attn_block_forward.1} parent=63 // pred_check_branch
        %411 = sbr.rel (%p409) target = $region68
      $region67: #{attn_block_forward.1} parent=63 // pred_region
        %v412 = vld [vmem:[%s398] sm:$0xff]
        %v413 = vld [vmem:[%s398 + $0x8] sm:$0xff]
        %v414 = vld [vmem:[%s1] sm:$0xff]
        %v415 = vld [vmem:[%s2] sm:$0xff]
        %v416 = vlaneseq
        %v417 = vshrl.u32 %v416, 7
        %vm418 = vcmask 1043456
        %v419 = vsel %vm418, %v412, 0.0
        %v420 = vsel %vm418, %v413, 0.0
        %v421 = vadd.f32 %v419, %v420
        %422 = vadd.xlane.f32.xlu0 %v421
        %v423 = vpop.xlane.xlu0 %422
        %v424 = vrot.slane %v423, 4
        %v425 = vadd.f32 %v423, %v424
        %v426 = vrot.slane %v425, 2
        %v427 = vadd.f32 %v425, %v426
        %v428 = vrot.slane %v427, 1
        %v429 = vadd.f32 %v427, %v428
        %s430 = vtos %v429
        %v431 = vrcp.pop 1024.0
        %s432 = vtos %v431
        %s433 = smul.f32 %s430, %s432
        %v434 = vstv %s433
        %v435 = vsub.f32 %v412, %v434
        %v436 = vsub.f32 %v413, %v434
        %v437 = vmul.f32 %v435, %v435
        %v438 = vmul.f32 %v436, %v436
        %v439 = vsel %vm418, %v437, 0.0
        %v440 = vsel %vm418, %v438, 0.0
        %v441 = vadd.f32 %v439, %v440
        %442 = vadd.xlane.f32.xlu0 %v441
        %v443 = vpop.xlane.xlu0 %442
        %v444 = vrot.slane %v443, 4
        %v445 = vadd.f32 %v443, %v444
        %v446 = vrot.slane %v445, 2
        %v447 = vadd.f32 %v445, %v446
        %v448 = vrot.slane %v447, 1
        %v449 = vadd.f32 %v447, %v448
        %s450 = vtos %v449
        %v451 = vrcp.pop 1024.0
        %s452 = vtos %v451
        %s453 = smul.f32 %s450, %s452
        %s454 = sadd.f32 %s453, 1e-06
        %v455 = vstv %s454
        %v456 = vrsqrt.pop %v455
        %s457 = vtos %v456
        %vm458 = vcmp.ge.s32.totalorder %v417, 0
        %vm459 = vcmp.lt.s32.totalorder %v417, 4
        %vm460 = vmand %vm458, %vm459
        %v461 = vstv %s457
        %v462 = vsel %vm460, %v461, 0.0
        %s463 = ssub.f32 0.0, %s433
        %s464 = smul.f32 %s463, %s457
        %v465 = vstv %s464
        %v466 = vsel %vm460, %v465, 0.0
        %v469 = vrot.slane %v412, 4
        %v470 = vrot.slane %v413, 4
        %v473 = vsel %vm418, %v469, 0.0
        %v474 = vsel %vm418, %v470, 0.0
        %v475 = vadd.f32 %v473, %v474
        %476 = vadd.xlane.f32.xlu0 %v475
        %v477 = vpop.xlane.xlu0 %476
        %v478 = vrot.slane %v477, 4
        %v479 = vadd.f32 %v477, %v478
        %v480 = vrot.slane %v479, 2
        %v481 = vadd.f32 %v479, %v480
        %v482 = vrot.slane %v481, 1
        %v483 = vadd.f32 %v481, %v482
        %s484 = vtos %v483
        %v485 = vrcp.pop 1024.0
        %s486 = vtos %v485
        %s487 = smul.f32 %s484, %s486
        %v488 = vstv %s487
        %v489 = vsub.f32 %v412, %v488
        %v490 = vsub.f32 %v413, %v488
        %v491 = vmul.f32 %v489, %v489
        %v492 = vmul.f32 %v490, %v490
        %v495 = vrot.slane %v491, 4
        %v496 = vrot.slane %v492, 4
        %v499 = vsel %vm418, %v495, 0.0
        %v500 = vsel %vm418, %v496, 0.0
        %v501 = vadd.f32 %v499, %v500
        %502 = vadd.xlane.f32.xlu0 %v501
        %v503 = vpop.xlane.xlu0 %502
        %v504 = vrot.slane %v503, 4
        %v505 = vadd.f32 %v503, %v504
        %v506 = vrot.slane %v505, 2
        %v507 = vadd.f32 %v505, %v506
        %v508 = vrot.slane %v507, 1
        %v509 = vadd.f32 %v507, %v508
        %s510 = vtos %v509
        %v511 = vrcp.pop 1024.0
        %s512 = vtos %v511
        %s513 = smul.f32 %s510, %s512
        %s514 = sadd.f32 %s513, 1e-06
        %v515 = vstv %s514
        %v516 = vrsqrt.pop %v515
        %s517 = vtos %v516
        %vm518 = vcmp.ge.s32.totalorder %v417, 4
        %vm519 = vcmp.lt.s32.totalorder %v417, 8
        %vm520 = vmand %vm518, %vm519
        %v521 = vstv %s517
        %v522 = vsel %vm520, %v521, %v462
        %s523 = ssub.f32 0.0, %s487
        %s524 = smul.f32 %s523, %s517
        %v525 = vstv %s524
        %v526 = vsel %vm520, %v525, %v466
        %v527 = vmul.f32 %v522, %v414
        %v528 = vmul.f32 %v526, %v414
        %v529 = vadd.f32 %v528, %v415
        %531 = vset.pattern.permute.xlu0 0
        %532 = vperm.xlu0 %531, %v527
        %v533 = vpop.permute.xlu0 %532
        %v535 = vmul.f32 %v412, %v533
        %v536 = vmul.f32 %v413, %v533
        %538 = vset.pattern.permute.xlu0 0
        %539 = vperm.xlu0 %538, %v529
        %v540 = vpop.permute.xlu0 %539
        %v542 = vadd.f32 %v535, %v540
        %v543 = vadd.f32 %v536, %v540
        %544 = vxpose.xlu0.b32.start [1/16] %v542, 128
        %545 = vxpose.xlu0.b32.cont [2/16] 0.0, 128
        %546 = vxpose.xlu0.b32.cont [3/16] 0.0, 128
        %547 = vxpose.xlu0.b32.cont [4/16] 0.0, 128
        %548 = vxpose.xlu0.b32.cont [5/16] 0.0, 128
        %549 = vxpose.xlu0.b32.cont [6/16] 0.0, 128
        %550 = vxpose.xlu0.b32.cont [7/16] 0.0, 128
        %551 = vxpose.xlu0.b32.cont [8/16] 0.0, 128
        %552 = vxpose.xlu0.b32.cont [9/16] 0.0, 128
        %553 = vxpose.xlu0.b32.cont [10/16] 0.0, 128
        %554 = vxpose.xlu0.b32.cont [11/16] 0.0, 128
        %555 = vxpose.xlu0.b32.cont [12/16] 0.0, 128
        %556 = vxpose.xlu0.b32.cont [13/16] 0.0, 128
        %557 = vxpose.xlu0.b32.cont [14/16] 0.0, 128
        %558 = vxpose.xlu0.b32.cont [15/16] 0.0, 128
        %559 = vxpose.xlu0.b32.end [16/16] 0.0, 128
        %v560 = vpop.trf.xlu0
        %v561 = vpop.trf.xlu0
        %v562 = vpop.trf.xlu0
        %v563 = vpop.trf.xlu0
        %v564 = vpop.trf.xlu0
        %v565 = vpop.trf.xlu0
        %v566 = vpop.trf.xlu0
        %v567 = vpop.trf.xlu0
        %v568 = vpop.trf.xlu0
        %v569 = vpop.trf.xlu0
        %v570 = vpop.trf.xlu0
        %v571 = vpop.trf.xlu0
        %v572 = vpop.trf.xlu0
        %v573 = vpop.trf.xlu0
        %v574 = vpop.trf.xlu0
        %v575 = vpop.trf.xlu0
        %576 = vxpose.xlu0.b32.start [1/16] %v543, 128
        %577 = vxpose.xlu0.b32.cont [2/16] 0.0, 128
        %578 = vxpose.xlu0.b32.cont [3/16] 0.0, 128
        %579 = vxpose.xlu0.b32.cont [4/16] 0.0, 128
        %580 = vxpose.xlu0.b32.cont [5/16] 0.0, 128
        %581 = vxpose.xlu0.b32.cont [6/16] 0.0, 128
        %582 = vxpose.xlu0.b32.cont [7/16] 0.0, 128
        %583 = vxpose.xlu0.b32.cont [8/16] 0.0, 128
        %584 = vxpose.xlu0.b32.cont [9/16] 0.0, 128
        %585 = vxpose.xlu0.b32.cont [10/16] 0.0, 128
        %586 = vxpose.xlu0.b32.cont [11/16] 0.0, 128
        %587 = vxpose.xlu0.b32.cont [12/16] 0.0, 128
        %588 = vxpose.xlu0.b32.cont [13/16] 0.0, 128
        %589 = vxpose.xlu0.b32.cont [14/16] 0.0, 128
        %590 = vxpose.xlu0.b32.cont [15/16] 0.0, 128
        %591 = vxpose.xlu0.b32.end [16/16] 0.0, 128
        %v592 = vpop.trf.xlu0
        %v593 = vpop.trf.xlu0
        %v594 = vpop.trf.xlu0
        %v595 = vpop.trf.xlu0
        %v596 = vpop.trf.xlu0
        %v597 = vpop.trf.xlu0
        %v598 = vpop.trf.xlu0
        %v599 = vpop.trf.xlu0
        %v600 = vpop.trf.xlu0
        %v601 = vpop.trf.xlu0
        %v602 = vpop.trf.xlu0
        %v603 = vpop.trf.xlu0
        %v604 = vpop.trf.xlu0
        %v605 = vpop.trf.xlu0
        %v606 = vpop.trf.xlu0
        %v607 = vpop.trf.xlu0
        %v608 = vld [vmem:[%s3] sm:$0xff]
        %v609 = vld [vmem:[%s4] sm:$0x1]
        %v611 = vlaneseq
        %v612 = vshrl.u32 %v611, 7
        %v613 = vsub.s32 0, %v612
        %v614 = vrot.slane %v609, %v613
        %vm616 = vcmask 64512
        %v618 = vsel %vm616, %v560, 0
        %v621 = vsel %vm616, %v561, 0
        %v624 = vsel %vm616, %v562, 0
        %v627 = vsel %vm616, %v563, 0
        %v630 = vsel %vm616, %v564, 0
        %v633 = vsel %vm616, %v565, 0
        %v636 = vsel %vm616, %v566, 0
        %v639 = vsel %vm616, %v567, 0
        %v642 = vsel %vm616, %v568, 0
        %v645 = vsel %vm616, %v569, 0
        %v648 = vsel %vm616, %v570, 0
        %v651 = vsel %vm616, %v571, 0
        %v654 = vsel %vm616, %v572, 0
        %v657 = vsel %vm616, %v573, 0
        %v660 = vsel %vm616, %v574, 0
        %v663 = vsel %vm616, %v575, 0
        %v666 = vsel %vm616, %v592, 0
        %v669 = vsel %vm616, %v593, 0
        %v672 = vsel %vm616, %v594, 0
        %v675 = vsel %vm616, %v595, 0
        %v678 = vsel %vm616, %v596, 0
        %v681 = vsel %vm616, %v597, 0
        %v684 = vsel %vm616, %v598, 0
        %v687 = vsel %vm616, %v599, 0
        %v690 = vsel %vm616, %v600, 0
        %v693 = vsel %vm616, %v601, 0
        %v696 = vsel %vm616, %v602, 0
        %v699 = vsel %vm616, %v603, 0
        %v702 = vsel %vm616, %v604, 0
        %v705 = vsel %vm616, %v605, 0
        %v708 = vsel %vm616, %v606, 0
        %v711 = vsel %vm616, %v607, 0
        %713 = vmatprep.subr.mxu0 0.0
        %714 = vmatpush1.msra.mxu0 %v608
        %715 = vmatprep.subr.mxu0 0.0
        %716 = vmatpush1.msra.mxu0 0.0
        %717 = vmatprep.subr.mxu0 0.0
        %718 = vmatpush1.msra.mxu0 0.0
        %719 = vmatprep.subr.mxu0 0.0
        %720 = vmatpush1.msra.mxu0 0.0
        %721 = vmatprep.subr.mxu0 0.0
        %722 = vmatpush1.msra.mxu0 0.0
        %723 = vmatprep.subr.mxu0 0.0
        %724 = vmatpush1.msra.mxu0 0.0
        %725 = vmatprep.subr.mxu0 0.0
        %726 = vmatpush1.msra.mxu0 0.0
        %727 = vmatprep.subr.mxu0 0.0
        %728 = vmatpush1.msra.mxu0 0.0
        %729 = vmatprep.subr.mxu0 0.0
        %730 = vmatpush1.msra.mxu0 0.0
        %731 = vmatprep.subr.mxu0 0.0
        %732 = vmatpush1.msra.mxu0 0.0
        %733 = vmatprep.subr.mxu0 0.0
        %734 = vmatpush1.msra.mxu0 0.0
        %735 = vmatprep.subr.mxu0 0.0
        %736 = vmatpush1.msra.mxu0 0.0
        %737 = vmatprep.subr.mxu0 0.0
        %738 = vmatpush1.msra.mxu0 0.0
        %739 = vmatprep.subr.mxu0 0.0
        %740 = vmatpush1.msra.mxu0 0.0
        %741 = vmatprep.subr.mxu0 0.0
        %742 = vmatpush1.msra.mxu0 0.0
        %743 = vmatprep.subr.mxu0 0.0
        %744 = vmatpush1.msra.mxu0 0.0
        %745 = vmatprep.subr.mxu0 0.0
        %746 = vmatpush1.msra.mxu0 0.0
        %747 = vmatprep.subr.mxu0 0.0
        %748 = vmatpush1.msra.mxu0 0.0
        %749 = vmatprep.subr.mxu0 0.0
        %750 = vmatpush1.msra.mxu0 0.0
        %751 = vmatprep.subr.mxu0 0.0
        %752 = vmatpush1.msra.mxu0 0.0
        %753 = vmatprep.subr.mxu0 0.0
        %754 = vmatpush1.msra.mxu0 0.0
        %755 = vmatprep.subr.mxu0 0.0
        %756 = vmatpush1.msra.mxu0 0.0
        %757 = vmatprep.subr.mxu0 0.0
        %758 = vmatpush1.msra.mxu0 0.0
        %759 = vmatprep.subr.mxu0 0.0
        %760 = vmatpush1.msra.mxu0 0.0
        %761 = vmatprep.subr.mxu0 0.0
        %762 = vmatpush1.msra.mxu0 0.0
        %763 = vmatprep.subr.mxu0 0.0
        %764 = vmatpush1.msra.mxu0 0.0
        %765 = vmatprep.subr.mxu0 0.0
        %766 = vmatpush1.msra.mxu0 0.0
        %767 = vmatprep.subr.mxu0 0.0
        %768 = vmatpush1.msra.mxu0 0.0
        %769 = vmatprep.subr.mxu0 0.0
        %770 = vmatpush1.msra.mxu0 0.0
        %771 = vmatprep.subr.mxu0 0.0
        %772 = vmatpush1.msra.mxu0 0.0
        %773 = vmatprep.subr.mxu0 0.0
        %774 = vmatpush1.msra.mxu0 0.0
        %775 = vmatprep.subr.mxu0 0.0
        %776 = vmatpush1.msra.mxu0 0.0
        %777 = vmatprep.mubr.f32.mxu0 0.0
        %778 = vmatmul.mubr.f32.gmra.mrb[0].mxu0 %v618
        %v779 = vpop.f32.mrb[0].mxu0
        %v780 = vadd.f32 %v614, %v779
        %v781 = vpop.f32.mrb[0].mxu0
        %782 = vmatprep.mubr.f32.mxu0 0.0
        %783 = vmatmul.mubr.f32.gmra.mrb[0].mxu0 %v621
        %v784 = vpop.f32.mrb[0].mxu0
        %v785 = vadd.f32 %v614, %v784
        %v786 = vpop.f32.mrb[0].mxu0
        %787 = vmatprep.mubr.f32.mxu0 0.0
        %788 = vmatmul.mubr.f32.gmra.mrb[0].mxu0 %v624
        %v789 = vpop.f32.mrb[0].mxu0
        %v790 = vadd.f32 %v614, %v789
        %v791 = vpop.f32.mrb[0].mxu0
        %792 = vmatprep.mubr.f32.mxu0 0.0
        %793 = vmatmul.mubr.f32.gmra.mrb[0].mxu0 %v627
        %v794 = vpop.f32.mrb[0].mxu0
        %v795 = vadd.f32 %v614, %v794
        %v796 = vpop.f32.mrb[0].mxu0
        %797 = vmatprep.mubr.f32.mxu0 0.0
        %798 = vmatmul.mubr.f32.gmra.mrb[0].mxu0 %v630
        %v799 = vpop.f32.mrb[0].mxu0
        %v800 = vadd.f32 %v614, %v799
        %v801 = vpop.f32.mrb[0].mxu0
        %802 = vmatprep.mubr.f32.mxu0 0.0
        %803 = vmatmul.mubr.f32.gmra.mrb[0].mxu0 %v633
        %v804 = vpop.f32.mrb[0].mxu0
        %v805 = vadd.f32 %v614, %v804
        %v806 = vpop.f32.mrb[0].mxu0
        %807 = vmatprep.mubr.f32.mxu0 0.0
        %808 = vmatmul.mubr.f32.gmra.mrb[0].mxu0 %v636
        %v809 = vpop.f32.mrb[0].mxu0
        %v810 = vadd.f32 %v614, %v809
        %v811 = vpop.f32.mrb[0].mxu0
        %812 = vmatprep.mubr.f32.mxu0 0.0
        %813 = vmatmul.mubr.f32.gmra.mrb[0].mxu0 %v639
        %v814 = vpop.f32.mrb[0].mxu0
        %v815 = vadd.f32 %v614, %v814
        %v816 = vpop.f32.mrb[0].mxu0
        %817 = vmatprep.mubr.f32.mxu0 0.0
        %818 = vmatmul.mubr.f32.gmra.mrb[0].mxu0 %v642
        %v819 = vpop.f32.mrb[0].mxu0
        %v820 = vadd.f32 %v614, %v819
        %v821 = vpop.f32.mrb[0].mxu0
        %822 = vmatprep.mubr.f32.mxu0 0.0
        %823 = vmatmul.mubr.f32.gmra.mrb[0].mxu0 %v645
        %v824 = vpop.f32.mrb[0].mxu0
        %v825 = vadd.f32 %v614, %v824
        %v826 = vpop.f32.mrb[0].mxu0
        %827 = vmatprep.mubr.f32.mxu0 0.0
        %828 = vmatmul.mubr.f32.gmra.mrb[0].mxu0 %v648
        %v829 = vpop.f32.mrb[0].mxu0
        %v830 = vadd.f32 %v614, %v829
        %v831 = vpop.f32.mrb[0].mxu0
        %832 = vmatprep.mubr.f32.mxu0 0.0
        %833 = vmatmul.mubr.f32.gmra.mrb[0].mxu0 %v651
        %v834 = vpop.f32.mrb[0].mxu0
        %v835 = vadd.f32 %v614, %v834
        %v836 = vpop.f32.mrb[0].mxu0
        %837 = vmatprep.mubr.f32.mxu0 0.0
        %838 = vmatmul.mubr.f32.gmra.mrb[0].mxu0 %v654
        %v839 = vpop.f32.mrb[0].mxu0
        %v840 = vadd.f32 %v614, %v839
        %v841 = vpop.f32.mrb[0].mxu0
        %842 = vmatprep.mubr.f32.mxu0 0.0
        %843 = vmatmul.mubr.f32.gmra.mrb[0].mxu0 %v657
        %v844 = vpop.f32.mrb[0].mxu0
        %v845 = vadd.f32 %v614, %v844
        %v846 = vpop.f32.mrb[0].mxu0
        %847 = vmatprep.mubr.f32.mxu0 0.0
        %848 = vmatmul.mubr.f32.gmra.mrb[0].mxu0 %v660
        %v849 = vpop.f32.mrb[0].mxu0
        %v850 = vadd.f32 %v614, %v849
        %v851 = vpop.f32.mrb[0].mxu0
        %852 = vmatprep.mubr.f32.mxu0 0.0
        %853 = vmatmul.mubr.f32.gmra.mrb[0].mxu0 %v663
        %v854 = vpop.f32.mrb[0].mxu0
        %v855 = vadd.f32 %v614, %v854
        %v856 = vpop.f32.mrb[0].mxu0
        %857 = vmatprep.mubr.f32.mxu0 0.0
        %858 = vmatmul.mubr.f32.gmra.mrb[0].mxu0 %v666
        %v859 = vpop.f32.mrb[0].mxu0
        %v860 = vadd.f32 %v614, %v859
        %v861 = vpop.f32.mrb[0].mxu0
        %862 = vmatprep.mubr.f32.mxu0 0.0
        %863 = vmatmul.mubr.f32.gmra.mrb[0].mxu0 %v669
        %v864 = vpop.f32.mrb[0].mxu0
        %v865 = vadd.f32 %v614, %v864
        %v866 = vpop.f32.mrb[0].mxu0
        %867 = vmatprep.mubr.f32.mxu0 0.0
        %868 = vmatmul.mubr.f32.gmra.mrb[0].mxu0 %v672
        %v869 = vpop.f32.mrb[0].mxu0
        %v870 = vadd.f32 %v614, %v869
        %v871 = vpop.f32.mrb[0].mxu0
        %872 = vmatprep.mubr.f32.mxu0 0.0
        %873 = vmatmul.mubr.f32.gmra.mrb[0].mxu0 %v675
        %v874 = vpop.f32.mrb[0].mxu0
        %v875 = vadd.f32 %v614, %v874
        %v876 = vpop.f32.mrb[0].mxu0
        %877 = vmatprep.mubr.f32.mxu0 0.0
        %878 = vmatmul.mubr.f32.gmra.mrb[0].mxu0 %v678
        %v879 = vpop.f32.mrb[0].mxu0
        %v880 = vadd.f32 %v614, %v879
        %v881 = vpop.f32.mrb[0].mxu0
        %882 = vmatprep.mubr.f32.mxu0 0.0
        %883 = vmatmul.mubr.f32.gmra.mrb[0].mxu0 %v681
        %v884 = vpop.f32.mrb[0].mxu0
        %v885 = vadd.f32 %v614, %v884
        %v886 = vpop.f32.mrb[0].mxu0
        %887 = vmatprep.mubr.f32.mxu0 0.0
        %888 = vmatmul.mubr.f32.gmra.mrb[0].mxu0 %v684
        %v889 = vpop.f32.mrb[0].mxu0
        %v890 = vadd.f32 %v614, %v889
        %v891 = vpop.f32.mrb[0].mxu0
        %892 = vmatprep.mubr.f32.mxu0 0.0
        %893 = vmatmul.mubr.f32.gmra.mrb[0].mxu0 %v687
        %v894 = vpop.f32.mrb[0].mxu0
        %v895 = vadd.f32 %v614, %v894
        %v896 = vpop.f32.mrb[0].mxu0
        %897 = vmatprep.mubr.f32.mxu0 0.0
        %898 = vmatmul.mubr.f32.gmra.mrb[0].mxu0 %v690
        %v899 = vpop.f32.mrb[0].mxu0
        %v900 = vadd.f32 %v614, %v899
        %v901 = vpop.f32.mrb[0].mxu0
        %902 = vmatprep.mubr.f32.mxu0 0.0
        %903 = vmatmul.mubr.f32.gmra.mrb[0].mxu0 %v693
        %v904 = vpop.f32.mrb[0].mxu0
        %v905 = vadd.f32 %v614, %v904
        %v906 = vpop.f32.mrb[0].mxu0
        %907 = vmatprep.mubr.f32.mxu0 0.0
        %908 = vmatmul.mubr.f32.gmra.mrb[0].mxu0 %v696
        %v909 = vpop.f32.mrb[0].mxu0
        %v910 = vadd.f32 %v614, %v909
        %v911 = vpop.f32.mrb[0].mxu0
        %912 = vmatprep.mubr.f32.mxu0 0.0
        %913 = vmatmul.mubr.f32.gmra.mrb[0].mxu0 %v699
        %v914 = vpop.f32.mrb[0].mxu0
        %v915 = vadd.f32 %v614, %v914
        %v916 = vpop.f32.mrb[0].mxu0
        %917 = vmatprep.mubr.f32.mxu0 0.0
        %918 = vmatmul.mubr.f32.gmra.mrb[0].mxu0 %v702
        %v919 = vpop.f32.mrb[0].mxu0
        %v920 = vadd.f32 %v614, %v919
        %v921 = vpop.f32.mrb[0].mxu0
        %922 = vmatprep.mubr.f32.mxu0 0.0
        %923 = vmatmul.mubr.f32.gmra.mrb[0].mxu0 %v705
        %v924 = vpop.f32.mrb[0].mxu0
        %v925 = vadd.f32 %v614, %v924
        %v926 = vpop.f32.mrb[0].mxu0
        %927 = vmatprep.mubr.f32.mxu0 0.0
        %928 = vmatmul.mubr.f32.gmra.mrb[0].mxu0 %v708
        %v929 = vpop.f32.mrb[0].mxu0
        %v930 = vadd.f32 %v614, %v929
        %v931 = vpop.f32.mrb[0].mxu0
        %932 = vmatprep.mubr.f32.mxu0 0.0
        %933 = vmatmul.mubr.f32.gmra.mrb[0].mxu0 %v711
        %v934 = vpop.f32.mrb[0].mxu0
        %v935 = vadd.f32 %v614, %v934
        %v936 = vpop.f32.mrb[0].mxu0
        %937 = vdwg.mxu0
        %v938 = vld [vmem:[%s7] sm:$0xff]
        %v939 = vld [vmem:[%s8] sm:$0x1]
        %v941 = vlaneseq
        %v942 = vshrl.u32 %v941, 7
        %v943 = vsub.s32 0, %v942
        %v944 = vrot.slane %v939, %v943
        %946 = vmatprep.subr.mxu0 0.0
        %947 = vmatpush1.msra.mxu0 %v938
        %948 = vmatprep.subr.mxu0 0.0
        %949 = vmatpush1.msra.mxu0 0.0
        %950 = vmatprep.subr.mxu0 0.0
        %951 = vmatpush1.msra.mxu0 0.0
        %952 = vmatprep.subr.mxu0 0.0
        %953 = vmatpush1.msra.mxu0 0.0
        %954 = vmatprep.subr.mxu0 0.0
        %955 = vmatpush1.msra.mxu0 0.0
        %956 = vmatprep.subr.mxu0 0.0
        %957 = vmatpush1.msra.mxu0 0.0
        %958 = vmatprep.subr.mxu0 0.0
        %959 = vmatpush1.msra.mxu0 0.0
        %960 = vmatprep.subr.mxu0 0.0
        %961 = vmatpush1.msra.mxu0 0.0
        %962 = vmatprep.subr.mxu0 0.0
        %963 = vmatpush1.msra.mxu0 0.0
        %964 = vmatprep.subr.mxu0 0.0
        %965 = vmatpush1.msra.mxu0 0.0
        %966 = vmatprep.subr.mxu0 0.0
        %967 = vmatpush1.msra.mxu0 0.0
        %968 = vmatprep.subr.mxu0 0.0
        %969 = vmatpush1.msra.mxu0 0.0
        %970 = vmatprep.subr.mxu0 0.0
        %971 = vmatpush1.msra.mxu0 0.0
        %972 = vmatprep.subr.mxu0 0.0
        %973 = vmatpush1.msra.mxu0 0.0
        %974 = vmatprep.subr.mxu0 0.0
        %975 = vmatpush1.msra.mxu0 0.0
        %976 = vmatprep.subr.mxu0 0.0
        %977 = vmatpush1.msra.mxu0 0.0
        %978 = vmatprep.subr.mxu0 0.0
        %979 = vmatpush1.msra.mxu0 0.0
        %980 = vmatprep.subr.mxu0 0.0
        %981 = vmatpush1.msra.mxu0 0.0
        %982 = vmatprep.subr.mxu0 0.0
        %983 = vmatpush1.msra.mxu0 0.0
        %984 = vmatprep.subr.mxu0 0.0
        %985 = vmatpush1.msra.mxu0 0.0
        %986 = vmatprep.subr.mxu0 0.0
        %987 = vmatpush1.msra.mxu0 0.0
        %988 = vmatprep.subr.mxu0 0.0
        %989 = vmatpush1.msra.mxu0 0.0
        %990 = vmatprep.subr.mxu0 0.0
        %991 = vmatpush1.msra.mxu0 0.0
        %992 = vmatprep.subr.mxu0 0.0
        %993 = vmatpush1.msra.mxu0 0.0
        %994 = vmatprep.subr.mxu0 0.0
        %995 = vmatpush1.msra.mxu0 0.0
        %996 = vmatprep.subr.mxu0 0.0
        %997 = vmatpush1.msra.mxu0 0.0
        %998 = vmatprep.subr.mxu0 0.0
        %999 = vmatpush1.msra.mxu0 0.0
        %1000 = vmatprep.subr.mxu0 0.0
        %1001 = vmatpush1.msra.mxu0 0.0
        %1002 = vmatprep.subr.mxu0 0.0
        %1003 = vmatpush1.msra.mxu0 0.0
        %1004 = vmatprep.subr.mxu0 0.0
        %1005 = vmatpush1.msra.mxu0 0.0
        %1006 = vmatprep.subr.mxu0 0.0
        %1007 = vmatpush1.msra.mxu0 0.0
        %1008 = vmatprep.subr.mxu0 0.0
        %1009 = vmatpush1.msra.mxu0 0.0
        %1010 = vmatprep.mubr.f32.mxu0 0.0
        %1011 = vmatmul.mubr.f32.gmra.mrb[0].mxu0 %v618
        %v1012 = vpop.f32.mrb[0].mxu0
        %v1013 = vadd.f32 %v944, %v1012
        %v1014 = vpop.f32.mrb[0].mxu0
        %1015 = vmatprep.mubr.f32.mxu0 0.0
        %1016 = vmatmul.mubr.f32.gmra.mrb[0].mxu0 %v621
        %v1017 = vpop.f32.mrb[0].mxu0
        %v1018 = vadd.f32 %v944, %v1017
        %v1019 = vpop.f32.mrb[0].mxu0
        %1020 = vmatprep.mubr.f32.mxu0 0.0
        %1021 = vmatmul.mubr.f32.gmra.mrb[0].mxu0 %v624
        %v1022 = vpop.f32.mrb[0].mxu0
        %v1023 = vadd.f32 %v944, %v1022
        %v1024 = vpop.f32.mrb[0].mxu0
        %1025 = vmatprep.mubr.f32.mxu0 0.0
        %1026 = vmatmul.mubr.f32.gmra.mrb[0].mxu0 %v627
        %v1027 = vpop.f32.mrb[0].mxu0
        %v1028 = vadd.f32 %v944, %v1027
        %v1029 = vpop.f32.mrb[0].mxu0
        %1030 = vmatprep.mubr.f32.mxu0 0.0
        %1031 = vmatmul.mubr.f32.gmra.mrb[0].mxu0 %v630
        %v1032 = vpop.f32.mrb[0].mxu0
        %v1033 = vadd.f32 %v944, %v1032
        %v1034 = vpop.f32.mrb[0].mxu0
        %1035 = vmatprep.mubr.f32.mxu0 0.0
        %1036 = vmatmul.mubr.f32.gmra.mrb[0].mxu0 %v633
        %v1037 = vpop.f32.mrb[0].mxu0
        %v1038 = vadd.f32 %v944, %v1037
        %v1039 = vpop.f32.mrb[0].mxu0
        %1040 = vmatprep.mubr.f32.mxu0 0.0
        %1041 = vmatmul.mubr.f32.gmra.mrb[0].mxu0 %v636
        %v1042 = vpop.f32.mrb[0].mxu0
        %v1043 = vadd.f32 %v944, %v1042
        %v1044 = vpop.f32.mrb[0].mxu0
        %1045 = vmatprep.mubr.f32.mxu0 0.0
        %1046 = vmatmul.mubr.f32.gmra.mrb[0].mxu0 %v639
        %v1047 = vpop.f32.mrb[0].mxu0
        %v1048 = vadd.f32 %v944, %v1047
        %v1049 = vpop.f32.mrb[0].mxu0
        %1050 = vmatprep.mubr.f32.mxu0 0.0
        %1051 = vmatmul.mubr.f32.gmra.mrb[0].mxu0 %v642
        %v1052 = vpop.f32.mrb[0].mxu0
        %v1053 = vadd.f32 %v944, %v1052
        %v1054 = vpop.f32.mrb[0].mxu0
        %1055 = vmatprep.mubr.f32.mxu0 0.0
        %1056 = vmatmul.mubr.f32.gmra.mrb[0].mxu0 %v645
        %v1057 = vpop.f32.mrb[0].mxu0
        %v1058 = vadd.f32 %v944, %v1057
        %v1059 = vpop.f32.mrb[0].mxu0
        %1060 = vmatprep.mubr.f32.mxu0 0.0
        %1061 = vmatmul.mubr.f32.gmra.mrb[0].mxu0 %v648
        %v1062 = vpop.f32.mrb[0].mxu0
        %v1063 = vadd.f32 %v944, %v1062
        %v1064 = vpop.f32.mrb[0].mxu0
        %1065 = vmatprep.mubr.f32.mxu0 0.0
        %1066 = vmatmul.mubr.f32.gmra.mrb[0].mxu0 %v651
        %v1067 = vpop.f32.mrb[0].mxu0
        %v1068 = vadd.f32 %v944, %v1067
        %v1069 = vpop.f32.mrb[0].mxu0
        %1070 = vmatprep.mubr.f32.mxu0 0.0
        %1071 = vmatmul.mubr.f32.gmra.mrb[0].mxu0 %v654
        %v1072 = vpop.f32.mrb[0].mxu0
        %v1073 = vadd.f32 %v944, %v1072
        %v1074 = vpop.f32.mrb[0].mxu0
        %1075 = vmatprep.mubr.f32.mxu0 0.0
        %1076 = vmatmul.mubr.f32.gmra.mrb[0].mxu0 %v657
        %v1077 = vpop.f32.mrb[0].mxu0
        %v1078 = vadd.f32 %v944, %v1077
        %v1079 = vpop.f32.mrb[0].mxu0
        %1080 = vmatprep.mubr.f32.mxu0 0.0
        %1081 = vmatmul.mubr.f32.gmra.mrb[0].mxu0 %v660
        %v1082 = vpop.f32.mrb[0].mxu0
        %v1083 = vadd.f32 %v944, %v1082
        %v1084 = vpop.f32.mrb[0].mxu0
        %1085 = vmatprep.mubr.f32.mxu0 0.0
        %1086 = vmatmul.mubr.f32.gmra.mrb[0].mxu0 %v663
        %v1087 = vpop.f32.mrb[0].mxu0
        %v1088 = vadd.f32 %v944, %v1087
        %v1089 = vpop.f32.mrb[0].mxu0
        %1090 = vmatprep.mubr.f32.mxu0 0.0
        %1091 = vmatmul.mubr.f32.gmra.mrb[0].mxu0 %v666
        %v1092 = vpop.f32.mrb[0].mxu0
        %v1093 = vadd.f32 %v944, %v1092
        %v1094 = vpop.f32.mrb[0].mxu0
        %1095 = vmatprep.mubr.f32.mxu0 0.0
        %1096 = vmatmul.mubr.f32.gmra.mrb[0].mxu0 %v669
        %v1097 = vpop.f32.mrb[0].mxu0
        %v1098 = vadd.f32 %v944, %v1097
        %v1099 = vpop.f32.mrb[0].mxu0
        %1100 = vmatprep.mubr.f32.mxu0 0.0
        %1101 = vmatmul.mubr.f32.gmra.mrb[0].mxu0 %v672
        %v1102 = vpop.f32.mrb[0].mxu0
        %v1103 = vadd.f32 %v944, %v1102
        %v1104 = vpop.f32.mrb[0].mxu0
        %1105 = vmatprep.mubr.f32.mxu0 0.0
        %1106 = vmatmul.mubr.f32.gmra.mrb[0].mxu0 %v675
        %v1107 = vpop.f32.mrb[0].mxu0
        %v1108 = vadd.f32 %v944, %v1107
        %v1109 = vpop.f32.mrb[0].mxu0
        %1110 = vmatprep.mubr.f32.mxu0 0.0
        %1111 = vmatmul.mubr.f32.gmra.mrb[0].mxu0 %v678
        %v1112 = vpop.f32.mrb[0].mxu0
        %v1113 = vadd.f32 %v944, %v1112
        %v1114 = vpop.f32.mrb[0].mxu0
        %1115 = vmatprep.mubr.f32.mxu0 0.0
        %1116 = vmatmul.mubr.f32.gmra.mrb[0].mxu0 %v681
        %v1117 = vpop.f32.mrb[0].mxu0
        %v1118 = vadd.f32 %v944, %v1117
        %v1119 = vpop.f32.mrb[0].mxu0
        %1120 = vmatprep.mubr.f32.mxu0 0.0
        %1121 = vmatmul.mubr.f32.gmra.mrb[0].mxu0 %v684
        %v1122 = vpop.f32.mrb[0].mxu0
        %v1123 = vadd.f32 %v944, %v1122
        %v1124 = vpop.f32.mrb[0].mxu0
        %1125 = vmatprep.mubr.f32.mxu0 0.0
        %1126 = vmatmul.mubr.f32.gmra.mrb[0].mxu0 %v687
        %v1127 = vpop.f32.mrb[0].mxu0
        %v1128 = vadd.f32 %v944, %v1127
        %v1129 = vpop.f32.mrb[0].mxu0
        %1130 = vmatprep.mubr.f32.mxu0 0.0
        %1131 = vmatmul.mubr.f32.gmra.mrb[0].mxu0 %v690
        %v1132 = vpop.f32.mrb[0].mxu0
        %v1133 = vadd.f32 %v944, %v1132
        %v1134 = vpop.f32.mrb[0].mxu0
        %1135 = vmatprep.mubr.f32.mxu0 0.0
        %1136 = vmatmul.mubr.f32.gmra.mrb[0].mxu0 %v693
        %v1137 = vpop.f32.mrb[0].mxu0
        %v1138 = vadd.f32 %v944, %v1137
        %v1139 = vpop.f32.mrb[0].mxu0
        %1140 = vmatprep.mubr.f32.mxu0 0.0
        %1141 = vmatmul.mubr.f32.gmra.mrb[0].mxu0 %v696
        %v1142 = vpop.f32.mrb[0].mxu0
        %v1143 = vadd.f32 %v944, %v1142
        %v1144 = vpop.f32.mrb[0].mxu0
        %1145 = vmatprep.mubr.f32.mxu0 0.0
        %1146 = vmatmul.mubr.f32.gmra.mrb[0].mxu0 %v699
        %v1147 = vpop.f32.mrb[0].mxu0
        %v1148 = vadd.f32 %v944, %v1147
        %v1149 = vpop.f32.mrb[0].mxu0
        %1150 = vmatprep.mubr.f32.mxu0 0.0
        %1151 = vmatmul.mubr.f32.gmra.mrb[0].mxu0 %v702
        %v1152 = vpop.f32.mrb[0].mxu0
        %v1153 = vadd.f32 %v944, %v1152
        %v1154 = vpop.f32.mrb[0].mxu0
        %1155 = vmatprep.mubr.f32.mxu0 0.0
        %1156 = vmatmul.mubr.f32.gmra.mrb[0].mxu0 %v705
        %v1157 = vpop.f32.mrb[0].mxu0
        %v1158 = vadd.f32 %v944, %v1157
        %v1159 = vpop.f32.mrb[0].mxu0
        %1160 = vmatprep.mubr.f32.mxu0 0.0
        %1161 = vmatmul.mubr.f32.gmra.mrb[0].mxu0 %v708
        %v1162 = vpop.f32.mrb[0].mxu0
        %v1163 = vadd.f32 %v944, %v1162
        %v1164 = vpop.f32.mrb[0].mxu0
        %1165 = vmatprep.mubr.f32.mxu0 0.0
        %1166 = vmatmul.mubr.f32.gmra.mrb[0].mxu0 %v711
        %v1167 = vpop.f32.mrb[0].mxu0
        %v1168 = vadd.f32 %v944, %v1167
        %v1169 = vpop.f32.mrb[0].mxu0
        %1170 = vdwg.mxu0
        %v1171 = vld [vmem:[%s5] sm:$0xff]
        %v1172 = vld [vmem:[%s6] sm:$0xff]
        %1174 = vset.pattern.permute.xlu0 0
        %1175 = vperm.xlu0 %1174, %v1172
        %v1176 = vpop.permute.xlu0 %1175
        %v1179 = vsel %vm616, %v1171, 0
        %1181 = vmatprep.subr.mxu0 %v543
        %1182 = vmatpush1.msra.mxu0 %v542
        %1183 = vmatprep.subr.mxu0 0.0
        %1184 = vmatpush1.msra.mxu0 0.0
        %1185 = vmatprep.subr.mxu0 0.0
        %1186 = vmatpush1.msra.mxu0 0.0
        %1187 = vmatprep.subr.mxu0 0.0
        %1188 = vmatpush1.msra.mxu0 0.0
        %1189 = vmatprep.subr.mxu0 0.0
        %1190 = vmatpush1.msra.mxu0 0.0
        %1191 = vmatprep.subr.mxu0 0.0
        %1192 = vmatpush1.msra.mxu0 0.0
        %1193 = vmatprep.subr.mxu0 0.0
        %1194 = vmatpush1.msra.mxu0 0.0
        %1195 = vmatprep.subr.mxu0 0.0
        %1196 = vmatpush1.msra.mxu0 0.0
        %1197 = vmatprep.subr.mxu0 0.0
        %1198 = vmatpush1.msra.mxu0 0.0
        %1199 = vmatprep.subr.mxu0 0.0
        %1200 = vmatpush1.msra.mxu0 0.0
        %1201 = vmatprep.subr.mxu0 0.0
        %1202 = vmatpush1.msra.mxu0 0.0
        %1203 = vmatprep.subr.mxu0 0.0
        %1204 = vmatpush1.msra.mxu0 0.0
        %1205 = vmatprep.subr.mxu0 0.0
        %1206 = vmatpush1.msra.mxu0 0.0
        %1207 = vmatprep.subr.mxu0 0.0
        %1208 = vmatpush1.msra.mxu0 0.0
        %1209 = vmatprep.subr.mxu0 0.0
        %1210 = vmatpush1.msra.mxu0 0.0
        %1211 = vmatprep.subr.mxu0 0.0
        %1212 = vmatpush1.msra.mxu0 0.0
        %1213 = vmatprep.subr.mxu0 0.0
        %1214 = vmatpush1.msra.mxu0 0.0
        %1215 = vmatprep.subr.mxu0 0.0
        %1216 = vmatpush1.msra.mxu0 0.0
        %1217 = vmatprep.subr.mxu0 0.0
        %1218 = vmatpush1.msra.mxu0 0.0
        %1219 = vmatprep.subr.mxu0 0.0
        %1220 = vmatpush1.msra.mxu0 0.0
        %1221 = vmatprep.subr.mxu0 0.0
        %1222 = vmatpush1.msra.mxu0 0.0
        %1223 = vmatprep.subr.mxu0 0.0
        %1224 = vmatpush1.msra.mxu0 0.0
        %1225 = vmatprep.subr.mxu0 0.0
        %1226 = vmatpush1.msra.mxu0 0.0
        %1227 = vmatprep.subr.mxu0 0.0
        %1228 = vmatpush1.msra.mxu0 0.0
        %1229 = vmatprep.subr.mxu0 0.0
        %1230 = vmatpush1.msra.mxu0 0.0
        %1231 = vmatprep.subr.mxu0 0.0
        %1232 = vmatpush1.msra.mxu0 0.0
        %1233 = vmatprep.subr.mxu0 0.0
        %1234 = vmatpush1.msra.mxu0 0.0
        %1235 = vmatprep.subr.mxu0 0.0
        %1236 = vmatpush1.msra.mxu0 0.0
        %1237 = vmatprep.subr.mxu0 0.0
        %1238 = vmatpush1.msra.mxu0 0.0
        %1239 = vmatprep.subr.mxu0 0.0
        %1240 = vmatpush1.msra.mxu0 0.0
        %1241 = vmatprep.subr.mxu0 0.0
        %1242 = vmatpush1.msra.mxu0 0.0
        %1243 = vmatprep.subr.mxu0 0.0
        %1244 = vmatpush1.msra.mxu0 0.0
        %1245 = vmatprep.mubr.f32.mxu0 0.0
        %1246 = vmatmul.mubr.f32.gmra.mrb[0].mxu0 %v1179
        %v1247 = vpop.f32.mrb[0].mxu0
        %v1248 = vadd.f32 %v1176, %v1247
        %v1249 = vpop.f32.mrb[0].mxu0
        %v1250 = vadd.f32 %v1176, %v1249
        %1251 = vdwg.mxu0
        %v1252 = vpack.c.bf16 %v785, %v780
        %v1253 = vpack.c.bf16 %v795, %v790
        %v1254 = vpack.c.bf16 %v805, %v800
        %v1255 = vpack.c.bf16 %v815, %v810
        %v1256 = vpack.c.bf16 %v825, %v820
        %v1257 = vpack.c.bf16 %v835, %v830
        %v1258 = vpack.c.bf16 %v845, %v840
        %v1259 = vpack.c.bf16 %v855, %v850
        %v1260 = vpack.c.bf16 %v865, %v860
        %v1261 = vpack.c.bf16 %v875, %v870
        %v1262 = vpack.c.bf16 %v885, %v880
        %v1263 = vpack.c.bf16 %v895, %v890
        %v1264 = vpack.c.bf16 %v905, %v900
        %v1265 = vpack.c.bf16 %v915, %v910
        %v1266 = vpack.c.bf16 %v925, %v920
        %v1267 = vpack.c.bf16 %v935, %v930
        %1268 = vst.msk [vmem:[#allocation2] sm:$0xff] %vm616, %v1252
        %1269 = vst.msk [vmem:[#allocation2 + $0x8] sm:$0xff] %vm616, %v1253
        %1270 = vst.msk [vmem:[#allocation2 + $0x10] sm:$0xff] %vm616, %v1254
        %1271 = vst.msk [vmem:[#allocation2 + $0x18] sm:$0xff] %vm616, %v1255
        %1272 = vst.msk [vmem:[#allocation2 + $0x20] sm:$0xff] %vm616, %v1256
        %1273 = vst.msk [vmem:[#allocation2 + $0x28] sm:$0xff] %vm616, %v1257
        %1274 = vst.msk [vmem:[#allocation2 + $0x30] sm:$0xff] %vm616, %v1258
        %1275 = vst.msk [vmem:[#allocation2 + $0x38] sm:$0xff] %vm616, %v1259
        %1276 = vst.msk [vmem:[#allocation2 + $0x40] sm:$0xff] %vm616, %v1260
        %1277 = vst.msk [vmem:[#allocation2 + $0x48] sm:$0xff] %vm616, %v1261
        %1278 = vst.msk [vmem:[#allocation2 + $0x50] sm:$0xff] %vm616, %v1262
        %1279 = vst.msk [vmem:[#allocation2 + $0x58] sm:$0xff] %vm616, %v1263
        %1280 = vst.msk [vmem:[#allocation2 + $0x60] sm:$0xff] %vm616, %v1264
        %1281 = vst.msk [vmem:[#allocation2 + $0x68] sm:$0xff] %vm616, %v1265
        %1282 = vst.msk [vmem:[#allocation2 + $0x70] sm:$0xff] %vm616, %v1266
        %1283 = vst.msk [vmem:[#allocation2 + $0x78] sm:$0xff] %vm616, %v1267
        %v1284 = vpack.c.bf16 %v1018, %v1013
        %v1285 = vpack.c.bf16 %v1028, %v1023
        %v1286 = vpack.c.bf16 %v1038, %v1033
        %v1287 = vpack.c.bf16 %v1048, %v1043
        %v1288 = vpack.c.bf16 %v1058, %v1053
        %v1289 = vpack.c.bf16 %v1068, %v1063
        %v1290 = vpack.c.bf16 %v1078, %v1073
        %v1291 = vpack.c.bf16 %v1088, %v1083
        %v1292 = vpack.c.bf16 %v1098, %v1093
        %v1293 = vpack.c.bf16 %v1108, %v1103
        %v1294 = vpack.c.bf16 %v1118, %v1113
        %v1295 = vpack.c.bf16 %v1128, %v1123
        %v1296 = vpack.c.bf16 %v1138, %v1133
        %v1297 = vpack.c.bf16 %v1148, %v1143
        %v1298 = vpack.c.bf16 %v1158, %v1153
        %v1299 = vpack.c.bf16 %v1168, %v1163
        %1300 = vst.msk [vmem:[#allocation4] sm:$0xff] %vm616, %v1284
        %1301 = vst.msk [vmem:[#allocation4 + $0x8] sm:$0xff] %vm616, %v1285
        %1302 = vst.msk [vmem:[#allocation4 + $0x10] sm:$0xff] %vm616, %v1286
        %1303 = vst.msk [vmem:[#allocation4 + $0x18] sm:$0xff] %vm616, %v1287
        %1304 = vst.msk [vmem:[#allocation4 + $0x20] sm:$0xff] %vm616, %v1288
        %1305 = vst.msk [vmem:[#allocation4 + $0x28] sm:$0xff] %vm616, %v1289
        %1306 = vst.msk [vmem:[#allocation4 + $0x30] sm:$0xff] %vm616, %v1290
        %1307 = vst.msk [vmem:[#allocation4 + $0x38] sm:$0xff] %vm616, %v1291
        %1308 = vst.msk [vmem:[#allocation4 + $0x40] sm:$0xff] %vm616, %v1292
        %1309 = vst.msk [vmem:[#allocation4 + $0x48] sm:$0xff] %vm616, %v1293
        %1310 = vst.msk [vmem:[#allocation4 + $0x50] sm:$0xff] %vm616, %v1294
        %1311 = vst.msk [vmem:[#allocation4 + $0x58] sm:$0xff] %vm616, %v1295
        %1312 = vst.msk [vmem:[#allocation4 + $0x60] sm:$0xff] %vm616, %v1296
        %1313 = vst.msk [vmem:[#allocation4 + $0x68] sm:$0xff] %vm616, %v1297
        %1314 = vst.msk [vmem:[#allocation4 + $0x70] sm:$0xff] %vm616, %v1298
        %1315 = vst.msk [vmem:[#allocation4 + $0x78] sm:$0xff] %vm616, %v1299
        %v1316 = vpack.c.bf16 %v1248, %v1248
        %v1317 = vpack.c.bf16 %v1250, %v1250
        %v1320 = vunpack.c.l.b16 %v1316
        %v1321 = vunpack.c.l.b16 %v1317
        %v1322 = vpack.c.b16 %v1321, %v1320
        %1324 = vst [vmem:[#allocation3] sm:$0xff] %v1322
      $region68: #{attn_block_forward.1} parent=63 // pred_fallthru
        _
      %s1325 = smul.u32 %s27, 128
      %s1326 = sshra.s32 %s1325, 4
      %s1327 = sand.u32 %s1325, 15
      %s1328 = smul.addr %s1326, 8
      %s1329 = scalar_lea.vmem [#allocation2], %s1328
      %v1330 = vld [vmem:[%s1329] sm:$0xff]
      %v1331 = vld [vmem:[%s1329 + $0x8] sm:$0xff]
      %v1332 = vld [vmem:[%s1329 + $0x10] sm:$0xff]
      %v1333 = vld [vmem:[%s1329 + $0x18] sm:$0xff]
      %v1334 = vld [vmem:[%s1329 + $0x20] sm:$0xff]
      %v1335 = vld [vmem:[%s1329 + $0x28] sm:$0xff]
      %v1336 = vld [vmem:[%s1329 + $0x30] sm:$0xff]
      %v1337 = vld [vmem:[%s1329 + $0x38] sm:$0xff]
      %v1338 = vld [vmem:[#allocation3] sm:$0xff]
      %v1340 = vunpack.c.l.b16 %v1338
      %v1341 = vunpack.c.h.b16 %v1338
      %v1342 = vpack.c.b16 %v1340, %v1340
      %v1343 = vpack.c.b16 %v1341, %v1341
      %vm1344 = vcmask 64512
      %v1346 = vsel %vm1344, %v1330, 0
      %v1349 = vsel %vm1344, %v1331, 0
      %v1352 = vsel %vm1344, %v1332, 0
      %v1355 = vsel %vm1344, %v1333, 0
      %v1358 = vsel %vm1344, %v1334, 0
      %v1361 = vsel %vm1344, %v1335, 0
      %v1364 = vsel %vm1344, %v1336, 0
      %v1367 = vsel %vm1344, %v1337, 0
      %vm1369 = vcmask 1043456
      %v1371 = vsel %vm1369, %v1342, 0
      %v1374 = vsel %vm1369, %v1343, 0
      %1376 = vmatprep.subr.bf16.mxu0 %v1374
      %1377 = vmatpush1.bf16.msra.mxu0 %v1371
      %1378 = vmatprep.subr.bf16.mxu0 0
      %1379 = vmatpush1.bf16.msra.mxu0 0
      %1380 = vmatprep.subr.bf16.mxu0 0
      %1381 = vmatpush1.bf16.msra.mxu0 0
      %1382 = vmatprep.subr.bf16.mxu0 0
      %1383 = vmatpush1.bf16.msra.mxu0 0
      %1384 = vmatprep.subr.bf16.mxu0 0
      %1385 = vmatpush1.bf16.msra.mxu0 0
      %1386 = vmatprep.subr.bf16.mxu0 0
      %1387 = vmatpush1.bf16.msra.mxu0 0
      %1388 = vmatprep.subr.bf16.mxu0 0
      %1389 = vmatpush1.bf16.msra.mxu0 0
      %1390 = vmatprep.subr.bf16.mxu0 0
      %1391 = vmatpush1.bf16.msra.mxu0 0
      %1392 = vmatprep.subr.bf16.mxu0 0
      %1393 = vmatpush1.bf16.msra.mxu0 0
      %1394 = vmatprep.subr.bf16.mxu0 0
      %1395 = vmatpush1.bf16.msra.mxu0 0
      %1396 = vmatprep.subr.bf16.mxu0 0
      %1397 = vmatpush1.bf16.msra.mxu0 0
      %1398 = vmatprep.subr.bf16.mxu0 0
      %1399 = vmatpush1.bf16.msra.mxu0 0
      %1400 = vmatprep.subr.bf16.mxu0 0
      %1401 = vmatpush1.bf16.msra.mxu0 0
      %1402 = vmatprep.subr.bf16.mxu0 0
      %1403 = vmatpush1.bf16.msra.mxu0 0
      %1404 = vmatprep.subr.bf16.mxu0 0
      %1405 = vmatpush1.bf16.msra.mxu0 0
      %1406 = vmatprep.subr.bf16.mxu0 0
      %1407 = vmatpush1.bf16.msra.mxu0 0
      %1408 = vmatprep.mubr.bf16.mxu0 0
      %1409 = vmatmul.mubr.bf16.gmra.mrb[0].mxu0 %v1346
      %v1410 = vpop.f32.mrb[0].mxu0
      %v1411 = vadd.f32 0.0, %v1410
      %v1412 = vpop.f32.mrb[0].mxu0
      %v1413 = vadd.f32 0.0, %v1412
      %v1414 = vpop.f32.mrb[0].mxu0
      %v1415 = vadd.f32 0.0, %v1414
      %v1416 = vpop.f32.mrb[0].mxu0
      %v1417 = vadd.f32 0.0, %v1416
      %1418 = vmatprep.mubr.bf16.mxu0 0
      %1419 = vmatmul.mubr.bf16.gmra.mrb[0].mxu0 %v1349
      %v1420 = vpop.f32.mrb[0].mxu0
      %v1421 = vadd.f32 0.0, %v1420
      %v1422 = vpop.f32.mrb[0].mxu0
      %v1423 = vadd.f32 0.0, %v1422
      %v1424 = vpop.f32.mrb[0].mxu0
      %v1425 = vadd.f32 0.0, %v1424
      %v1426 = vpop.f32.mrb[0].mxu0
      %v1427 = vadd.f32 0.0, %v1426
      %1428 = vmatprep.mubr.bf16.mxu0 0
      %1429 = vmatmul.mubr.bf16.gmra.mrb[0].mxu0 %v1352
      %v1430 = vpop.f32.mrb[0].mxu0
      %v1431 = vadd.f32 0.0, %v1430
      %v1432 = vpop.f32.mrb[0].mxu0
      %v1433 = vadd.f32 0.0, %v1432
      %v1434 = vpop.f32.mrb[0].mxu0
      %v1435 = vadd.f32 0.0, %v1434
      %v1436 = vpop.f32.mrb[0].mxu0
      %v1437 = vadd.f32 0.0, %v1436
      %1438 = vmatprep.mubr.bf16.mxu0 0
      %1439 = vmatmul.mubr.bf16.gmra.mrb[0].mxu0 %v1355
      %v1440 = vpop.f32.mrb[0].mxu0
      %v1441 = vadd.f32 0.0, %v1440
      %v1442 = vpop.f32.mrb[0].mxu0
      %v1443 = vadd.f32 0.0, %v1442
      %v1444 = vpop.f32.mrb[0].mxu0
      %v1445 = vadd.f32 0.0, %v1444
      %v1446 = vpop.f32.mrb[0].mxu0
      %v1447 = vadd.f32 0.0, %v1446
      %1448 = vmatprep.mubr.bf16.mxu0 0
      %1449 = vmatmul.mubr.bf16.gmra.mrb[0].mxu0 %v1358
      %v1450 = vpop.f32.mrb[0].mxu0
      %v1451 = vadd.f32 0.0, %v1450
      %v1452 = vpop.f32.mrb[0].mxu0
      %v1453 = vadd.f32 0.0, %v1452
      %v1454 = vpop.f32.mrb[0].mxu0
      %v1455 = vadd.f32 0.0, %v1454
      %v1456 = vpop.f32.mrb[0].mxu0
      %v1457 = vadd.f32 0.0, %v1456
      %1458 = vmatprep.mubr.bf16.mxu0 0
      %1459 = vmatmul.mubr.bf16.gmra.mrb[0].mxu0 %v1361
      %v1460 = vpop.f32.mrb[0].mxu0
      %v1461 = vadd.f32 0.0, %v1460
      %v1462 = vpop.f32.mrb[0].mxu0
      %v1463 = vadd.f32 0.0, %v1462
      %v1464 = vpop.f32.mrb[0].mxu0
      %v1465 = vadd.f32 0.0, %v1464
      %v1466 = vpop.f32.mrb[0].mxu0
      %v1467 = vadd.f32 0.0, %v1466
      %1468 = vmatprep.mubr.bf16.mxu0 0
      %1469 = vmatmul.mubr.bf16.gmra.mrb[0].mxu0 %v1364
      %v1470 = vpop.f32.mrb[0].mxu0
      %v1471 = vadd.f32 0.0, %v1470
      %v1472 = vpop.f32.mrb[0].mxu0
      %v1473 = vadd.f32 0.0, %v1472
      %v1474 = vpop.f32.mrb[0].mxu0
      %v1475 = vadd.f32 0.0, %v1474
      %v1476 = vpop.f32.mrb[0].mxu0
      %v1477 = vadd.f32 0.0, %v1476
      %1478 = vmatprep.mubr.bf16.mxu0 0
      %1479 = vmatmul.mubr.bf16.gmra.mrb[0].mxu0 %v1367
      %v1480 = vpop.f32.mrb[0].mxu0
      %v1481 = vadd.f32 0.0, %v1480
      %v1482 = vpop.f32.mrb[0].mxu0
      %v1483 = vadd.f32 0.0, %v1482
      %v1484 = vpop.f32.mrb[0].mxu0
      %v1485 = vadd.f32 0.0, %v1484
      %v1486 = vpop.f32.mrb[0].mxu0
      %v1487 = vadd.f32 0.0, %v1486
      %1488 = vdwg.mxu0
      %v1489 = vmax.f32 %v1411, %v1413
      %1490 = vmax.xlane.f32.xlu0 %v1489
      %v1491 = vpop.xlane.xlu0 %1490
      %v1492 = vmax.f32 %v1415, %v1417
      %1493 = vmax.xlane.f32.xlu0 %v1492
      %v1494 = vpop.xlane.xlu0 %1493
      %v1495 = vmax.f32 %v1421, %v1423
      %1496 = vmax.xlane.f32.xlu0 %v1495
      %v1497 = vpop.xlane.xlu0 %1496
      %v1498 = vmax.f32 %v1425, %v1427
      %1499 = vmax.xlane.f32.xlu0 %v1498
      %v1500 = vpop.xlane.xlu0 %1499
      %v1501 = vmax.f32 %v1431, %v1433
      %1502 = vmax.xlane.f32.xlu0 %v1501
      %v1503 = vpop.xlane.xlu0 %1502
      %v1504 = vmax.f32 %v1435, %v1437
      %1505 = vmax.xlane.f32.xlu0 %v1504
      %v1506 = vpop.xlane.xlu0 %1505
      %v1507 = vmax.f32 %v1441, %v1443
      %1508 = vmax.xlane.f32.xlu0 %v1507
      %v1509 = vpop.xlane.xlu0 %1508
      %v1510 = vmax.f32 %v1445, %v1447
      %1511 = vmax.xlane.f32.xlu0 %v1510
      %v1512 = vpop.xlane.xlu0 %1511
      %v1513 = vmax.f32 %v1451, %v1453
      %1514 = vmax.xlane.f32.xlu0 %v1513
      %v1515 = vpop.xlane.xlu0 %1514
      %v1516 = vmax.f32 %v1455, %v1457
      %1517 = vmax.xlane.f32.xlu0 %v1516
      %v1518 = vpop.xlane.xlu0 %1517
      %v1519 = vmax.f32 %v1461, %v1463
      %1520 = vmax.xlane.f32.xlu0 %v1519
      %v1521 = vpop.xlane.xlu0 %1520
      %v1522 = vmax.f32 %v1465, %v1467
      %1523 = vmax.xlane.f32.xlu0 %v1522
      %v1524 = vpop.xlane.xlu0 %1523
      %v1525 = vmax.f32 %v1471, %v1473
      %1526 = vmax.xlane.f32.xlu0 %v1525
      %v1527 = vpop.xlane.xlu0 %1526
      %v1528 = vmax.f32 %v1475, %v1477
      %1529 = vmax.xlane.f32.xlu0 %v1528
      %v1530 = vpop.xlane.xlu0 %1529
      %v1531 = vmax.f32 %v1481, %v1483
      %1532 = vmax.xlane.f32.xlu0 %v1531
      %v1533 = vpop.xlane.xlu0 %1532
      %v1534 = vmax.f32 %v1485, %v1487
      %1535 = vmax.xlane.f32.xlu0 %v1534
      %v1536 = vpop.xlane.xlu0 %1535
      %v1537 = vsub.f32 %v1411, %v1491
      %v1538 = vsub.f32 %v1413, %v1491
      %v1539 = vsub.f32 %v1415, %v1494
      %v1540 = vsub.f32 %v1417, %v1494
      %v1541 = vsub.f32 %v1421, %v1497
      %v1542 = vsub.f32 %v1423, %v1497
      %v1543 = vsub.f32 %v1425, %v1500
      %v1544 = vsub.f32 %v1427, %v1500
      %v1545 = vsub.f32 %v1431, %v1503
      %v1546 = vsub.f32 %v1433, %v1503
      %v1547 = vsub.f32 %v1435, %v1506
      %v1548 = vsub.f32 %v1437, %v1506
      %v1549 = vsub.f32 %v1441, %v1509
      %v1550 = vsub.f32 %v1443, %v1509
      %v1551 = vsub.f32 %v1445, %v1512
      %v1552 = vsub.f32 %v1447, %v1512
      %v1553 = vsub.f32 %v1451, %v1515
      %v1554 = vsub.f32 %v1453, %v1515
      %v1555 = vsub.f32 %v1455, %v1518
      %v1556 = vsub.f32 %v1457, %v1518
      %v1557 = vsub.f32 %v1461, %v1521
      %v1558 = vsub.f32 %v1463, %v1521
      %v1559 = vsub.f32 %v1465, %v1524
      %v1560 = vsub.f32 %v1467, %v1524
      %v1561 = vsub.f32 %v1471, %v1527
      %v1562 = vsub.f32 %v1473, %v1527
      %v1563 = vsub.f32 %v1475, %v1530
      %v1564 = vsub.f32 %v1477, %v1530
      %v1565 = vsub.f32 %v1481, %v1533
      %v1566 = vsub.f32 %v1483, %v1533
      %v1567 = vsub.f32 %v1485, %v1536
      %v1568 = vsub.f32 %v1487, %v1536
      %v1569 = vmul.f32 %v1537, 1.442695
      %v1570 = vpow.pop %v1569
      %v1571 = vmul.f32 %v1538, 1.442695
      %v1572 = vpow.pop %v1571
      %v1573 = vmul.f32 %v1539, 1.442695
      %v1574 = vpow.pop %v1573
      %v1575 = vmul.f32 %v1540, 1.442695
      %v1576 = vpow.pop %v1575
      %v1577 = vmul.f32 %v1541, 1.442695
      %v1578 = vpow.pop %v1577
      %v1579 = vmul.f32 %v1542, 1.442695
      %v1580 = vpow.pop %v1579
      %v1581 = vmul.f32 %v1543, 1.442695
      %v1582 = vpow.pop %v1581
      %v1583 = vmul.f32 %v1544, 1.442695
      %v1584 = vpow.pop %v1583
      %v1585 = vmul.f32 %v1545, 1.442695
      %v1586 = vpow.pop %v1585
      %v1587 = vmul.f32 %v1546, 1.442695
      %v1588 = vpow.pop %v1587
      %v1589 = vmul.f32 %v1547, 1.442695
      %v1590 = vpow.pop %v1589
      %v1591 = vmul.f32 %v1548, 1.442695
      %v1592 = vpow.pop %v1591
      %v1593 = vmul.f32 %v1549, 1.442695
      %v1594 = vpow.pop %v1593
      %v1595 = vmul.f32 %v1550, 1.442695
      %v1596 = vpow.pop %v1595
      %v1597 = vmul.f32 %v1551, 1.442695
      %v1598 = vpow.pop %v1597
      %v1599 = vmul.f32 %v1552, 1.442695
      %v1600 = vpow.pop %v1599
      %v1601 = vmul.f32 %v1553, 1.442695
      %v1602 = vpow.pop %v1601
      %v1603 = vmul.f32 %v1554, 1.442695
      %v1604 = vpow.pop %v1603
      %v1605 = vmul.f32 %v1555, 1.442695
      %v1606 = vpow.pop %v1605
      %v1607 = vmul.f32 %v1556, 1.442695
      %v1608 = vpow.pop %v1607
      %v1609 = vmul.f32 %v1557, 1.442695
      %v1610 = vpow.pop %v1609
      %v1611 = vmul.f32 %v1558, 1.442695
      %v1612 = vpow.pop %v1611
      %v1613 = vmul.f32 %v1559, 1.442695
      %v1614 = vpow.pop %v1613
      %v1615 = vmul.f32 %v1560, 1.442695
      %v1616 = vpow.pop %v1615
      %v1617 = vmul.f32 %v1561, 1.442695
      %v1618 = vpow.pop %v1617
      %v1619 = vmul.f32 %v1562, 1.442695
      %v1620 = vpow.pop %v1619
      %v1621 = vmul.f32 %v1563, 1.442695
      %v1622 = vpow.pop %v1621
      %v1623 = vmul.f32 %v1564, 1.442695
      %v1624 = vpow.pop %v1623
      %v1625 = vmul.f32 %v1565, 1.442695
      %v1626 = vpow.pop %v1625
      %v1627 = vmul.f32 %v1566, 1.442695
      %v1628 = vpow.pop %v1627
      %v1629 = vmul.f32 %v1567, 1.442695
      %v1630 = vpow.pop %v1629
      %v1631 = vmul.f32 %v1568, 1.442695
      %v1632 = vpow.pop %v1631
      %v1633 = vadd.f32 %v1570, %v1572
      %1634 = vadd.xlane.f32.xlu0 %v1633
      %v1635 = vpop.xlane.xlu0 %1634
      %v1636 = vadd.f32 %v1574, %v1576
      %1637 = vadd.xlane.f32.xlu0 %v1636
      %v1638 = vpop.xlane.xlu0 %1637
      %v1639 = vadd.f32 %v1578, %v1580
      %1640 = vadd.xlane.f32.xlu0 %v1639
      %v1641 = vpop.xlane.xlu0 %1640
      %v1642 = vadd.f32 %v1582, %v1584
      %1643 = vadd.xlane.f32.xlu0 %v1642
      %v1644 = vpop.xlane.xlu0 %1643
      %v1645 = vadd.f32 %v1586, %v1588
      %1646 = vadd.xlane.f32.xlu0 %v1645
      %v1647 = vpop.xlane.xlu0 %1646
      %v1648 = vadd.f32 %v1590, %v1592
      %1649 = vadd.xlane.f32.xlu0 %v1648
      %v1650 = vpop.xlane.xlu0 %1649
      %v1651 = vadd.f32 %v1594, %v1596
      %1652 = vadd.xlane.f32.xlu0 %v1651
      %v1653 = vpop.xlane.xlu0 %1652
      %v1654 = vadd.f32 %v1598, %v1600
      %1655 = vadd.xlane.f32.xlu0 %v1654
      %v1656 = vpop.xlane.xlu0 %1655
      %v1657 = vadd.f32 %v1602, %v1604
      %1658 = vadd.xlane.f32.xlu0 %v1657
      %v1659 = vpop.xlane.xlu0 %1658
      %v1660 = vadd.f32 %v1606, %v1608
      %1661 = vadd.xlane.f32.xlu0 %v1660
      %v1662 = vpop.xlane.xlu0 %1661
      %v1663 = vadd.f32 %v1610, %v1612
      %1664 = vadd.xlane.f32.xlu0 %v1663
      %v1665 = vpop.xlane.xlu0 %1664
      %v1666 = vadd.f32 %v1614, %v1616
      %1667 = vadd.xlane.f32.xlu0 %v1666
      %v1668 = vpop.xlane.xlu0 %1667
      %v1669 = vadd.f32 %v1618, %v1620
      %1670 = vadd.xlane.f32.xlu0 %v1669
      %v1671 = vpop.xlane.xlu0 %1670
      %v1672 = vadd.f32 %v1622, %v1624
      %1673 = vadd.xlane.f32.xlu0 %v1672
      %v1674 = vpop.xlane.xlu0 %1673
      %v1675 = vadd.f32 %v1626, %v1628
      %1676 = vadd.xlane.f32.xlu0 %v1675
      %v1677 = vpop.xlane.xlu0 %1676
      %v1678 = vadd.f32 %v1630, %v1632
      %1679 = vadd.xlane.f32.xlu0 %v1678
      %v1680 = vpop.xlane.xlu0 %1679
      %v1681 = vrcp.pop %v1635
      %v1682 = vrcp.pop %v1638
      %v1683 = vrcp.pop %v1641
      %v1684 = vrcp.pop %v1644
      %v1685 = vrcp.pop %v1647
      %v1686 = vrcp.pop %v1650
      %v1687 = vrcp.pop %v1653
      %v1688 = vrcp.pop %v1656
      %v1689 = vrcp.pop %v1659
      %v1690 = vrcp.pop %v1662
      %v1691 = vrcp.pop %v1665
      %v1692 = vrcp.pop %v1668
      %v1693 = vrcp.pop %v1671
      %v1694 = vrcp.pop %v1674
      %v1695 = vrcp.pop %v1677
      %v1696 = vrcp.pop %v1680
      %v1697 = vmul.f32 %v1570, %v1681
      %v1698 = vmul.f32 %v1572, %v1681
      %v1699 = vmul.f32 %v1574, %v1682
      %v1700 = vmul.f32 %v1576, %v1682
      %v1701 = vmul.f32 %v1578, %v1683
      %v1702 = vmul.f32 %v1580, %v1683
      %v1703 = vmul.f32 %v1582, %v1684
      %v1704 = vmul.f32 %v1584, %v1684
      %v1705 = vmul.f32 %v1586, %v1685
      %v1706 = vmul.f32 %v1588, %v1685
      %v1707 = vmul.f32 %v1590, %v1686
      %v1708 = vmul.f32 %v1592, %v1686
      %v1709 = vmul.f32 %v1594, %v1687
      %v1710 = vmul.f32 %v1596, %v1687
      %v1711 = vmul.f32 %v1598, %v1688
      %v1712 = vmul.f32 %v1600, %v1688
      %v1713 = vmul.f32 %v1602, %v1689
      %v1714 = vmul.f32 %v1604, %v1689
      %v1715 = vmul.f32 %v1606, %v1690
      %v1716 = vmul.f32 %v1608, %v1690
      %v1717 = vmul.f32 %v1610, %v1691
      %v1718 = vmul.f32 %v1612, %v1691
      %v1719 = vmul.f32 %v1614, %v1692
      %v1720 = vmul.f32 %v1616, %v1692
      %v1721 = vmul.f32 %v1618, %v1693
      %v1722 = vmul.f32 %v1620, %v1693
      %v1723 = vmul.f32 %v1622, %v1694
      %v1724 = vmul.f32 %v1624, %v1694
      %v1725 = vmul.f32 %v1626, %v1695
      %v1726 = vmul.f32 %v1628, %v1695
      %v1727 = vmul.f32 %v1630, %v1696
      %v1728 = vmul.f32 %v1632, %v1696
      %v1729 = vpack.c.bf16 %v1699, %v1697
      %v1730 = vpack.c.bf16 %v1700, %v1698
      %v1731 = vpack.c.bf16 %v1703, %v1701
      %v1732 = vpack.c.bf16 %v1704, %v1702
      %v1733 = vpack.c.bf16 %v1707, %v1705
      %v1734 = vpack.c.bf16 %v1708, %v1706
      %v1735 = vpack.c.bf16 %v1711, %v1709
      %v1736 = vpack.c.bf16 %v1712, %v1710
      %v1737 = vpack.c.bf16 %v1715, %v1713
      %v1738 = vpack.c.bf16 %v1716, %v1714
      %v1739 = vpack.c.bf16 %v1719, %v1717
      %v1740 = vpack.c.bf16 %v1720, %v1718
      %v1741 = vpack.c.bf16 %v1723, %v1721
      %v1742 = vpack.c.bf16 %v1724, %v1722
      %v1743 = vpack.c.bf16 %v1727, %v1725
      %v1744 = vpack.c.bf16 %v1728, %v1726
      %v1745 = vld [vmem:[#allocation4] sm:$0xff]
      %v1746 = vld [vmem:[#allocation4 + $0x8] sm:$0xff]
      %v1747 = vld [vmem:[#allocation4 + $0x10] sm:$0xff]
      %v1748 = vld [vmem:[#allocation4 + $0x18] sm:$0xff]
      %v1749 = vld [vmem:[#allocation4 + $0x20] sm:$0xff]
      %v1750 = vld [vmem:[#allocation4 + $0x28] sm:$0xff]
      %v1751 = vld [vmem:[#allocation4 + $0x30] sm:$0xff]
      %v1752 = vld [vmem:[#allocation4 + $0x38] sm:$0xff]
      %v1753 = vld [vmem:[#allocation4 + $0x40] sm:$0xff]
      %v1754 = vld [vmem:[#allocation4 + $0x48] sm:$0xff]
      %v1755 = vld [vmem:[#allocation4 + $0x50] sm:$0xff]
      %v1756 = vld [vmem:[#allocation4 + $0x58] sm:$0xff]
      %v1757 = vld [vmem:[#allocation4 + $0x60] sm:$0xff]
      %v1758 = vld [vmem:[#allocation4 + $0x68] sm:$0xff]
      %v1759 = vld [vmem:[#allocation4 + $0x70] sm:$0xff]
      %v1760 = vld [vmem:[#allocation4 + $0x78] sm:$0xff]
      %1761 = vmatprep.subr.bf16.mxu0 0
      %1762 = vmatpush1.bf16.msra.mxu0 %v1745
      %1763 = vmatprep.subr.bf16.mxu0 0
      %1764 = vmatpush1.bf16.msra.mxu0 %v1746
      %1765 = vmatprep.subr.bf16.mxu0 0
      %1766 = vmatpush1.bf16.msra.mxu0 %v1747
      %1767 = vmatprep.subr.bf16.mxu0 0
      %1768 = vmatpush1.bf16.msra.mxu0 %v1748
      %1769 = vmatprep.subr.bf16.mxu0 0
      %1770 = vmatpush1.bf16.msra.mxu0 %v1749
      %1771 = vmatprep.subr.bf16.mxu0 0
      %1772 = vmatpush1.bf16.msra.mxu0 %v1750
      %1773 = vmatprep.subr.bf16.mxu0 0
      %1774 = vmatpush1.bf16.msra.mxu0 %v1751
      %1775 = vmatprep.subr.bf16.mxu0 0
      %1776 = vmatpush1.bf16.msra.mxu0 %v1752
      %1777 = vmatprep.subr.bf16.mxu0 0
      %1778 = vmatpush1.bf16.msra.mxu0 %v1753
      %1779 = vmatprep.subr.bf16.mxu0 0
      %1780 = vmatpush1.bf16.msra.mxu0 %v1754
      %1781 = vmatprep.subr.bf16.mxu0 0
      %1782 = vmatpush1.bf16.msra.mxu0 %v1755
      %1783 = vmatprep.subr.bf16.mxu0 0
      %1784 = vmatpush1.bf16.msra.mxu0 %v1756
      %1785 = vmatprep.subr.bf16.mxu0 0
      %1786 = vmatpush1.bf16.msra.mxu0 %v1757
      %1787 = vmatprep.subr.bf16.mxu0 0
      %1788 = vmatpush1.bf16.msra.mxu0 %v1758
      %1789 = vmatprep.subr.bf16.mxu0 0
      %1790 = vmatpush1.bf16.msra.mxu0 %v1759
      %1791 = vmatprep.subr.bf16.mxu0 0
      %1792 = vmatpush1.bf16.msra.mxu0 %v1760
      %1793 = vmatprep.mubr.bf16.mxu0 %v1730
      %1794 = vmatmul.mubr.bf16.gmra.mrb[0].mxu0 %v1729
      %v1795 = vpop.f32.mrb[0].mxu0
      %v1796 = vadd.f32 0.0, %v1795
      %v1797 = vpop.f32.mrb[0].mxu0
      %v1798 = vpop.f32.mrb[0].mxu0
      %v1799 = vadd.f32 0.0, %v1798
      %v1800 = vpop.f32.mrb[0].mxu0
      %1801 = vmatprep.mubr.bf16.mxu0 %v1732
      %1802 = vmatmul.mubr.bf16.gmra.mrb[0].mxu0 %v1731
      %v1803 = vpop.f32.mrb[0].mxu0
      %v1804 = vadd.f32 0.0, %v1803
      %v1805 = vpop.f32.mrb[0].mxu0
      %v1806 = vpop.f32.mrb[0].mxu0
      %v1807 = vadd.f32 0.0, %v1806
      %v1808 = vpop.f32.mrb[0].mxu0
      %1809 = vmatprep.mubr.bf16.mxu0 %v1734
      %1810 = vmatmul.mubr.bf16.gmra.mrb[0].mxu0 %v1733
      %v1811 = vpop.f32.mrb[0].mxu0
      %v1812 = vadd.f32 0.0, %v1811
      %v1813 = vpop.f32.mrb[0].mxu0
      %v1814 = vpop.f32.mrb[0].mxu0
      %v1815 = vadd.f32 0.0, %v1814
      %v1816 = vpop.f32.mrb[0].mxu0
      %1817 = vmatprep.mubr.bf16.mxu0 %v1736
      %1818 = vmatmul.mubr.bf16.gmra.mrb[0].mxu0 %v1735
      %v1819 = vpop.f32.mrb[0].mxu0
      %v1820 = vadd.f32 0.0, %v1819
      %v1821 = vpop.f32.mrb[0].mxu0
      %v1822 = vpop.f32.mrb[0].mxu0
      %v1823 = vadd.f32 0.0, %v1822
      %v1824 = vpop.f32.mrb[0].mxu0
      %1825 = vmatprep.mubr.bf16.mxu0 %v1738
      %1826 = vmatmul.mubr.bf16.gmra.mrb[0].mxu0 %v1737
      %v1827 = vpop.f32.mrb[0].mxu0
      %v1828 = vadd.f32 0.0, %v1827
      %v1829 = vpop.f32.mrb[0].mxu0
      %v1830 = vpop.f32.mrb[0].mxu0
      %v1831 = vadd.f32 0.0, %v1830
      %v1832 = vpop.f32.mrb[0].mxu0
      %1833 = vmatprep.mubr.bf16.mxu0 %v1740
      %1834 = vmatmul.mubr.bf16.gmra.mrb[0].mxu0 %v1739
      %v1835 = vpop.f32.mrb[0].mxu0
      %v1836 = vadd.f32 0.0, %v1835
      %v1837 = vpop.f32.mrb[0].mxu0
      %v1838 = vpop.f32.mrb[0].mxu0
      %v1839 = vadd.f32 0.0, %v1838
      %v1840 = vpop.f32.mrb[0].mxu0
      %1841 = vmatprep.mubr.bf16.mxu0 %v1742
      %1842 = vmatmul.mubr.bf16.gmra.mrb[0].mxu0 %v1741
      %v1843 = vpop.f32.mrb[0].mxu0
      %v1844 = vadd.f32 0.0, %v1843
      %v1845 = vpop.f32.mrb[0].mxu0
      %v1846 = vpop.f32.mrb[0].mxu0
      %v1847 = vadd.f32 0.0, %v1846
      %v1848 = vpop.f32.mrb[0].mxu0
      %1849 = vmatprep.mubr.bf16.mxu0 %v1744
      %1850 = vmatmul.mubr.bf16.gmra.mrb[0].mxu0 %v1743
      %v1851 = vpop.f32.mrb[0].mxu0
      %v1852 = vadd.f32 0.0, %v1851
      %v1853 = vpop.f32.mrb[0].mxu0
      %v1854 = vpop.f32.mrb[0].mxu0
      %v1855 = vadd.f32 0.0, %v1854
      %v1856 = vpop.f32.mrb[0].mxu0
      %1857 = vdwg.mxu0
      %v1858 = vld [vmem:[%s9] sm:$0xff]
      %v1859 = vld [vmem:[%s10] sm:$0x1]
      %v1861 = vlaneseq
      %v1862 = vshrl.u32 %v1861, 7
      %v1863 = vsub.s32 0, %v1862
      %v1864 = vrot.slane %v1859, %v1863
      %v1867 = vsel %vm1344, %v1796, 0
      %v1870 = vsel %vm1344, %v1799, 0
      %v1873 = vsel %vm1344, %v1804, 0
      %v1876 = vsel %vm1344, %v1807, 0
      %v1879 = vsel %vm1344, %v1812, 0
      %v1882 = vsel %vm1344, %v1815, 0
      %v1885 = vsel %vm1344, %v1820, 0
      %v1888 = vsel %vm1344, %v1823, 0
      %v1891 = vsel %vm1344, %v1828, 0
      %v1894 = vsel %vm1344, %v1831, 0
      %v1897 = vsel %vm1344, %v1836, 0
      %v1900 = vsel %vm1344, %v1839, 0
      %v1903 = vsel %vm1344, %v1844, 0
      %v1906 = vsel %vm1344, %v1847, 0
      %v1909 = vsel %vm1344, %v1852, 0
      %v1912 = vsel %vm1344, %v1855, 0
      %1914 = vmatprep.subr.mxu0 0.0
      %1915 = vmatpush1.msra.mxu0 %v1858
      %1916 = vmatprep.subr.mxu0 0.0
      %1917 = vmatpush1.msra.mxu0 0.0
      %1918 = vmatprep.subr.mxu0 0.0
      %1919 = vmatpush1.msra.mxu0 0.0
      %1920 = vmatprep.subr.mxu0 0.0
      %1921 = vmatpush1.msra.mxu0 0.0
      %1922 = vmatprep.subr.mxu0 0.0
      %1923 = vmatpush1.msra.mxu0 0.0
      %1924 = vmatprep.subr.mxu0 0.0
      %1925 = vmatpush1.msra.mxu0 0.0
      %1926 = vmatprep.subr.mxu0 0.0
      %1927 = vmatpush1.msra.mxu0 0.0
      %1928 = vmatprep.subr.mxu0 0.0
      %1929 = vmatpush1.msra.mxu0 0.0
      %1930 = vmatprep.subr.mxu0 0.0
      %1931 = vmatpush1.msra.mxu0 0.0
      %1932 = vmatprep.subr.mxu0 0.0
      %1933 = vmatpush1.msra.mxu0 0.0
      %1934 = vmatprep.subr.mxu0 0.0
      %1935 = vmatpush1.msra.mxu0 0.0
      %1936 = vmatprep.subr.mxu0 0.0
      %1937 = vmatpush1.msra.mxu0 0.0
      %1938 = vmatprep.subr.mxu0 0.0
      %1939 = vmatpush1.msra.mxu0 0.0
      %1940 = vmatprep.subr.mxu0 0.0
      %1941 = vmatpush1.msra.mxu0 0.0
      %1942 = vmatprep.subr.mxu0 0.0
      %1943 = vmatpush1.msra.mxu0 0.0
      %1944 = vmatprep.subr.mxu0 0.0
      %1945 = vmatpush1.msra.mxu0 0.0
      %1946 = vmatprep.subr.mxu0 0.0
      %1947 = vmatpush1.msra.mxu0 0.0
      %1948 = vmatprep.subr.mxu0 0.0
      %1949 = vmatpush1.msra.mxu0 0.0
      %1950 = vmatprep.subr.mxu0 0.0
      %1951 = vmatpush1.msra.mxu0 0.0
      %1952 = vmatprep.subr.mxu0 0.0
      %1953 = vmatpush1.msra.mxu0 0.0
      %1954 = vmatprep.subr.mxu0 0.0
      %1955 = vmatpush1.msra.mxu0 0.0
      %1956 = vmatprep.subr.mxu0 0.0
      %1957 = vmatpush1.msra.mxu0 0.0
      %1958 = vmatprep.subr.mxu0 0.0
      %1959 = vmatpush1.msra.mxu0 0.0
      %1960 = vmatprep.subr.mxu0 0.0
      %1961 = vmatpush1.msra.mxu0 0.0
      %1962 = vmatprep.subr.mxu0 0.0
      %1963 = vmatpush1.msra.mxu0 0.0
      %1964 = vmatprep.subr.mxu0 0.0
      %1965 = vmatpush1.msra.mxu0 0.0
      %1966 = vmatprep.subr.mxu0 0.0
      %1967 = vmatpush1.msra.mxu0 0.0
      %1968 = vmatprep.subr.mxu0 0.0
      %1969 = vmatpush1.msra.mxu0 0.0
      %1970 = vmatprep.subr.mxu0 0.0
      %1971 = vmatpush1.msra.mxu0 0.0
      %1972 = vmatprep.subr.mxu0 0.0
      %1973 = vmatpush1.msra.mxu0 0.0
      %1974 = vmatprep.subr.mxu0 0.0
      %1975 = vmatpush1.msra.mxu0 0.0
      %1976 = vmatprep.subr.mxu0 0.0
      %1977 = vmatpush1.msra.mxu0 0.0
      %1978 = vmatprep.mubr.f32.mxu0 0.0
      %1979 = vmatmul.mubr.f32.gmra.mrb[0].mxu0 %v1867
      %v1980 = vpop.f32.mrb[0].mxu0
      %v1981 = vadd.f32 %v1864, %v1980
      %v1982 = vpop.f32.mrb[0].mxu0
      %1983 = vmatprep.mubr.f32.mxu0 0.0
      %1984 = vmatmul.mubr.f32.gmra.mrb[0].mxu0 %v1870
      %v1985 = vpop.f32.mrb[0].mxu0
      %v1986 = vadd.f32 %v1864, %v1985
      %v1987 = vpop.f32.mrb[0].mxu0
      %1988 = vmatprep.mubr.f32.mxu0 0.0
      %1989 = vmatmul.mubr.f32.gmra.mrb[0].mxu0 %v1873
      %v1990 = vpop.f32.mrb[0].mxu0
      %v1991 = vadd.f32 %v1864, %v1990
      %v1992 = vpop.f32.mrb[0].mxu0
      %1993 = vmatprep.mubr.f32.mxu0 0.0
      %1994 = vmatmul.mubr.f32.gmra.mrb[0].mxu0 %v1876
      %v1995 = vpop.f32.mrb[0].mxu0
      %v1996 = vadd.f32 %v1864, %v1995
      %v1997 = vpop.f32.mrb[0].mxu0
      %1998 = vmatprep.mubr.f32.mxu0 0.0
      %1999 = vmatmul.mubr.f32.gmra.mrb[0].mxu0 %v1879
      %v2000 = vpop.f32.mrb[0].mxu0
      %v2001 = vadd.f32 %v1864, %v2000
      %v2002 = vpop.f32.mrb[0].mxu0
      %2003 = vmatprep.mubr.f32.mxu0 0.0
      %2004 = vmatmul.mubr.f32.gmra.mrb[0].mxu0 %v1882
      %v2005 = vpop.f32.mrb[0].mxu0
      %v2006 = vadd.f32 %v1864, %v2005
      %v2007 = vpop.f32.mrb[0].mxu0
      %2008 = vmatprep.mubr.f32.mxu0 0.0
      %2009 = vmatmul.mubr.f32.gmra.mrb[0].mxu0 %v1885
      %v2010 = vpop.f32.mrb[0].mxu0
      %v2011 = vadd.f32 %v1864, %v2010
      %v2012 = vpop.f32.mrb[0].mxu0
      %2013 = vmatprep.mubr.f32.mxu0 0.0
      %2014 = vmatmul.mubr.f32.gmra.mrb[0].mxu0 %v1888
      %v2015 = vpop.f32.mrb[0].mxu0
      %v2016 = vadd.f32 %v1864, %v2015
      %v2017 = vpop.f32.mrb[0].mxu0
      %2018 = vmatprep.mubr.f32.mxu0 0.0
      %2019 = vmatmul.mubr.f32.gmra.mrb[0].mxu0 %v1891
      %v2020 = vpop.f32.mrb[0].mxu0
      %v2021 = vadd.f32 %v1864, %v2020
      %v2022 = vpop.f32.mrb[0].mxu0
      %2023 = vmatprep.mubr.f32.mxu0 0.0
      %2024 = vmatmul.mubr.f32.gmra.mrb[0].mxu0 %v1894
      %v2025 = vpop.f32.mrb[0].mxu0
      %v2026 = vadd.f32 %v1864, %v2025
      %v2027 = vpop.f32.mrb[0].mxu0
      %2028 = vmatprep.mubr.f32.mxu0 0.0
      %2029 = vmatmul.mubr.f32.gmra.mrb[0].mxu0 %v1897
      %v2030 = vpop.f32.mrb[0].mxu0
      %v2031 = vadd.f32 %v1864, %v2030
      %v2032 = vpop.f32.mrb[0].mxu0
      %2033 = vmatprep.mubr.f32.mxu0 0.0
      %2034 = vmatmul.mubr.f32.gmra.mrb[0].mxu0 %v1900
      %v2035 = vpop.f32.mrb[0].mxu0
      %v2036 = vadd.f32 %v1864, %v2035
      %v2037 = vpop.f32.mrb[0].mxu0
      %2038 = vmatprep.mubr.f32.mxu0 0.0
      %2039 = vmatmul.mubr.f32.gmra.mrb[0].mxu0 %v1903
      %v2040 = vpop.f32.mrb[0].mxu0
      %v2041 = vadd.f32 %v1864, %v2040
      %v2042 = vpop.f32.mrb[0].mxu0
      %2043 = vmatprep.mubr.f32.mxu0 0.0
      %2044 = vmatmul.mubr.f32.gmra.mrb[0].mxu0 %v1906
      %v2045 = vpop.f32.mrb[0].mxu0
      %v2046 = vadd.f32 %v1864, %v2045
      %v2047 = vpop.f32.mrb[0].mxu0
      %2048 = vmatprep.mubr.f32.mxu0 0.0
      %2049 = vmatmul.mubr.f32.gmra.mrb[0].mxu0 %v1909
      %v2050 = vpop.f32.mrb[0].mxu0
      %v2051 = vadd.f32 %v1864, %v2050
      %v2052 = vpop.f32.mrb[0].mxu0
      %2053 = vmatprep.mubr.f32.mxu0 0.0
      %2054 = vmatmul.mubr.f32.gmra.mrb[0].mxu0 %v1912
      %v2055 = vpop.f32.mrb[0].mxu0
      %v2056 = vadd.f32 %v1864, %v2055
      %v2057 = vpop.f32.mrb[0].mxu0
      %2058 = vdwg.mxu0
      %s2059 = sshra.s32 %s1325, 7
      %s2060 = sand.u32 %s1325, 127
      %s2061 = smul.addr %s2059, 8
      %s2062 = scalar_lea.vmem %s398, %s2061
      %v2063 = vld [vmem:[%s2062] sm:$0xff]
      %2064 = vxpose.xlu0.b32.start [1/16] %v1981, 128
      %2065 = vxpose.xlu0.b32.cont [2/16] %v1986, 128
      %2066 = vxpose.xlu0.b32.cont [3/16] %v1991, 128
      %2067 = vxpose.xlu0.b32.cont [4/16] %v1996, 128
      %2068 = vxpose.xlu0.b32.cont [5/16] %v2001, 128
      %2069 = vxpose.xlu0.b32.cont [6/16] %v2006, 128
      %2070 = vxpose.xlu0.b32.cont [7/16] %v2011, 128
      %2071 = vxpose.xlu0.b32.cont [8/16] %v2016, 128
      %2072 = vxpose.xlu0.b32.cont [9/16] %v2021, 128
      %2073 = vxpose.xlu0.b32.cont [10/16] %v2026, 128
      %2074 = vxpose.xlu0.b32.cont [11/16] %v2031, 128
      %2075 = vxpose.xlu0.b32.cont [12/16] %v2036, 128
      %2076 = vxpose.xlu0.b32.cont [13/16] %v2041, 128
      %2077 = vxpose.xlu0.b32.cont [14/16] %v2046, 128
      %2078 = vxpose.xlu0.b32.cont [15/16] %v2051, 128
      %2079 = vxpose.xlu0.b32.end [16/16] %v2056, 128
      %v2080 = vpop.trf.xlu0
      %v2081 = vpop.trf.xlu0
      %v2082 = vpop.trf.xlu0
      %v2083 = vpop.trf.xlu0
      %v2084 = vpop.trf.xlu0
      %v2085 = vpop.trf.xlu0
      %v2086 = vpop.trf.xlu0
      %v2087 = vpop.trf.xlu0
      %v2088 = vpop.trf.xlu0
      %v2089 = vpop.trf.xlu0
      %v2090 = vpop.trf.xlu0
      %v2091 = vpop.trf.xlu0
      %v2092 = vpop.trf.xlu0
      %v2093 = vpop.trf.xlu0
      %v2094 = vpop.trf.xlu0
      %v2095 = vpop.trf.xlu0
      %v2096 = vadd.f32 %v2063, %v2080
      %2097 = vst [vmem:[%s406] sm:$0xff] %v2096
      %p2098 = scmp.lt.s32.totalorder %s26, 1
      %s2099 = scalar_select %p2098, %s26, 1
      %p2100 = scmp.lt.s32.totalorder %s27, 1
      %s2101 = scalar_select %p2100, %s27, 1
      %s2102 = smul.addr %s2099, 2
      %s2103 = sadd.s32 %s2101, %s2102
      %s2104 = smul.addr %s2103, 8
      %s2105 = scalar_lea.vmem %s11, %s2104
      // Predicated region
      $region69: #{attn_block_forward.1} parent=63 // pred_check
        %p2106 = pneg %p290
      $region70: #{attn_block_forward.1} parent=63 // pred_check_branch
        %2108 = sbr.rel (%p2106) target = $region72
      $region71: #{attn_block_forward.1} parent=63 // pred_region
        _
      $region72: #{attn_block_forward.1} parent=63 // pred_fallthru
        _
    $region64: #{attn_block_forward.1} parent=5 // pred_fallthru
      _
    %p2109 = scmp.le.s32.totalorder 2, %s17
    // Predicated region
    $region73: #{attn_block_forward.1} parent=5 // pred_check
      %p2110 = pneg %p2109
    $region74: #{attn_block_forward.1} parent=5 // pred_check_branch
      %2112 = sbr.rel (%p2110) target = $region76
    $region75: #{attn_block_forward.1} parent=5 // pred_region
      %s2113 = ssub.s32 %s17, 2
      // Predicated region
      $region77: #{attn_block_forward.1} parent=75 // pred_check
        %p2114 = pneg %p296
      $region78: #{attn_block_forward.1} parent=75 // pred_check_branch
        %2116 = sbr.rel (%p2114) target = $region80
      $region79: #{attn_block_forward.1} parent=75 // pred_region
        %p2117 = scmp.lt.s32.totalorder %s28, 1
        %s2118 = scalar_select %p2117, %s28, 1
        %p2119 = scmp.lt.s32.totalorder %s29, 1
        %s2120 = scalar_select %p2119, %s29, 1
        %s2121 = smul.addr %s2118, 2
        %s2122 = sadd.s32 %s2120, %s2121
        %s2123 = smul.addr %s2122, 8
        %s2124 = scalar_lea.vmem %s11, %s2123
      $region80: #{attn_block_forward.1} parent=75 // pred_fallthru
        _
    $region76: #{attn_block_forward.1} parent=5 // pred_fallthru
      _
  $region6: #{attn_block_forward.1} parent=0 // loop_footer
    %s21 = sadd.s32 1, %s17
  $region7: #{attn_block_forward.1} parent=0 // loop_footer_branch
    %16 = sbr.rel target = $region3
  $region8: #{attn_block_forward.1} parent=0 // loop_exit
    _

</llo_original>
